<compile_context>
chip_gen: v7x
topology: tpu7x:2x2x1
jax: 0.10.0
libtpu: 0.0.40
codegen_flags: <defaults>
</compile_context>

<pallas_src>
import math
import numpy as np
import jax
import jax.numpy as jnp
from jax.experimental import pallas as pl
from jax.experimental.pallas import tpu as pltpu

DEGREES = list(range(10))
HIDDEN = 32
TL_MAX = 8192     # max samples per grid step (lane axis); multiple of 128
SLAB_LANES = 128  # packed-weight slab width (lane-tile aligned)

# Packed-weight slab column layout (rows = HIDDEN = 32 sublanes):
#   col 0      : W1  (32, 1)
#   col 1      : b1  (32,)
#   col 2      : b2  (32,)
#   col 3      : b3' padded to 32 rows (rows >= 10 are zero)   [coeff-scaled]
#   cols 4:36  : W2  (32, 32)           (out, in)
#   cols 36:68 : W3' padded to (32, 32) (rows >= 10 are zero)  [coeff-scaled]
_C_W1, _C_B1, _C_B2, _C_B3 = 0, 1, 2, 3
_C_W2_LO, _C_W2_HI = 4, 4 + HIDDEN
_C_W3_LO, _C_W3_HI = _C_W2_HI, _C_W2_HI + HIDDEN


def _zonal_coeffs(degrees):
    return [math.sqrt((2 * l + 1) / (4.0 * math.pi)) for l in degrees]


def harmonics_kernel(x_ref, w_ref, o_ref):
    # x_ref: (2, TL)  row 0 = r, row 1 = theta   (samples on lanes)
    # w_ref: (32, 128) packed weight slab        (constant across grid steps)
    # o_ref: (1, TL)  lane-dense output block
    r = x_ref[0:1, :]        # (1, TL)
    theta = x_ref[1:2, :]    # (1, TL)

    w = w_ref[...]                               # (32, 128)
    w1 = w[:, _C_W1:_C_W1 + 1]                   # (32, 1)
    b1 = w[:, _C_B1:_C_B1 + 1]                   # (32, 1)
    b2 = w[:, _C_B2:_C_B2 + 1]                   # (32, 1)
    b3 = w[:, _C_B3:_C_B3 + 1]                   # (32, 1), coeff-scaled, rows >= 10 zero
    W2 = w[:, _C_W2_LO:_C_W2_HI]                 # (32, 32)
    W3 = w[:, _C_W3_LO:_C_W3_HI]                 # (32, 32), coeff-scaled, rows >= 10 zero

    # --- FCNN: 1 -> 32 -> 32 -> 10 (rows >= 10 of R are zero), tanh ---------
    # First layer (in_features == 1) is a broadcasted multiply, no MXU needed.
    h1 = jnp.tanh(w1 * r + b1)                                                # (32, TL)
    h2 = jnp.tanh(jnp.dot(W2, h1, preferred_element_type=jnp.float32) + b2)   # (32, TL)
    # Zonal coefficients are already folded into W3/b3 (pack_weights).
    R = jnp.dot(W3, h2, preferred_element_type=jnp.float32) + b3              # (32, TL)

    # --- Zonal spherical harmonics via Legendre recurrence, fused with the
    # (R * Y).sum(dim=1) contraction. R[l:l+1, :] are free sublane slices. ---
    xc = jnp.cos(theta)                  # (1, TL)
    p_prev = jnp.ones_like(xc)           # P_0
    acc = R[0:1, :] * p_prev
    p_curr = xc                          # P_1
    acc = acc + R[1:2, :] * p_curr
    for l in range(1, len(DEGREES) - 1):
        # (l+1) P_{l+1} = (2l+1) x P_l - l P_{l-1}
        p_next = ((2 * l + 1) * xc * p_curr - l * p_prev) * (1.0 / (l + 1))
        acc = acc + R[l + 1:l + 2, :] * p_next
        p_prev, p_curr = p_curr, p_next

    o_ref[...] = acc                     # (1, TL)


def pack_weights(params):
    """Pack (W,b) triplets (nn.Linear layout: W=(out,in), b=(out,)) into one
    (HIDDEN, SLAB_LANES) f32 slab.  W3/b3 rows are zero-padded 10 -> 32 and
    pre-scaled by the zonal coefficients sqrt((2l+1)/4pi) (absorbed into the
    final linear layer -> kernel skips the per-degree scalar multiplies)."""
    (W1, b1), (W2, b2), (W3, b3) = params
    coeffs = jnp.asarray(_zonal_coeffs(DEGREES), jnp.float32)        # (10,)
    W3s = W3 * coeffs[:, None]
    b3s = b3 * coeffs
    slab = jnp.zeros((HIDDEN, SLAB_LANES), jnp.float32)
    slab = slab.at[:, _C_W1].set(W1[:, 0])
    slab = slab.at[:, _C_B1].set(b1)
    slab = slab.at[:, _C_B2].set(b2)
    slab = slab.at[:len(DEGREES), _C_B3].set(b3s)
    slab = slab.at[:, _C_W2_LO:_C_W2_HI].set(W2)
    slab = slab.at[:len(DEGREES), _C_W3_LO:_C_W3_HI].set(W3s)
    return slab


def _choose_tile(n, tl_max=TL_MAX):
    """Pick the lane-tile size: as large as possible (amortize ~0.35us/step
    fixed overhead) while keeping >= 2 grid steps when n > 128, so v7x's two
    TensorCores both get work.  Always a multiple of 128."""
    half = -(-n // 2)                       # ceil(n / 2)
    half = ((half + 127) // 128) * 128      # round up to lane multiple
    return max(128, min(tl_max, half))


def harmonics_nn(r, theta, phi, params):
    """HarmonicsNN.forward.  r/theta/phi: (N, 1) f32.  Returns (N, 1) f32."""
    del phi  # zonal (m == 0) harmonics are phi-independent; no DMA for it.
    n = r.shape[0]
    tl = _choose_tile(n)
    n_pad = ((n + tl - 1) // tl) * tl
    grid = n_pad // tl

    # Samples-on-lanes layout: pack r/theta into a single (2, N) operand.
    x = jnp.concatenate([r.reshape(1, n), theta.reshape(1, n)], axis=0)
    if n_pad != n:
        x = jnp.pad(x, ((0, 0), (0, n_pad - n)))
    slab = pack_weights(params)

    cost = pl.CostEstimate(
        flops=2 * 2 * HIDDEN * HIDDEN * n_pad + 40 * n_pad,   # two 32x32 matmuls + elementwise
        transcendentals=(2 * HIDDEN + 1) * n_pad,             # 64 tanh + 1 cos per sample
        bytes_accessed=16 * n_pad + 4 * HIDDEN * SLAB_LANES,  # r,theta,out + weight slab
    )

    out = pl.pallas_call(
        harmonics_kernel,
        out_shape=jax.ShapeDtypeStruct((1, n_pad), jnp.float32),
        grid=(grid,),
        in_specs=[
            pl.BlockSpec((2, tl), lambda i: (0, i)),                # r/theta block
            pl.BlockSpec((HIDDEN, SLAB_LANES), lambda i: (0, 0)),   # weight slab (revisited)
        ],
        out_specs=pl.BlockSpec((1, tl), lambda i: (0, i)),
        compiler_params=pltpu.CompilerParams(
            dimension_semantics=("parallel",)),                     # megacore-shardable
        cost_estimate=cost,
    )(x, slab)

    return out[0, :n].reshape(n, 1)


def init_params(keys):
    """torch.nn.Linear-style init: W=(out,in), b=(out,), U[-1/sqrt(fan_in), +]."""
    def linear(kw, kb, fan_in, fan_out):
        bound = 1.0 / math.sqrt(fan_in)
        W = jax.random.uniform(kw, (fan_out, fan_in), jnp.float32, -bound, bound)
        b = jax.random.uniform(kb, (fan_out,), jnp.float32, -bound, bound)
        return W, b

    return [linear(keys[0], keys[1], 1, HIDDEN),
            linear(keys[2], keys[3], HIDDEN, HIDDEN),
            linear(keys[4], keys[5], HIDDEN, len(DEGREES))]


def reference(r, theta, phi, params):
    """Pure-JAX reference of HarmonicsNN.forward (zonal harmonics_fn)."""
    del phi
    (W1, b1), (W2, b2), (W3, b3) = params
    h1 = jnp.tanh(r @ W1.T + b1)
    h2 = jnp.tanh(h1 @ W2.T + b2)
    R = h2 @ W3.T + b3                                       # (N, 10)
    x = jnp.cos(theta)
    ps = [jnp.ones_like(x), x]
    for l in range(1, len(DEGREES) - 1):
        ps.append(((2 * l + 1) * x * ps[-1] - l * ps[-2]) / (l + 1))
    Y = jnp.concatenate(ps[:len(DEGREES)], axis=1)
    Y = Y * jnp.asarray(_zonal_coeffs(DEGREES), jnp.float32)[None, :]
    return jnp.sum(R * Y, axis=1, keepdims=True)             # (N, 1)


if __name__ == "__main__":
    key = jax.random.PRNGKey(0)
    kr, kt, kp, *wkeys = jax.random.split(key, 9)

    # N deliberately NOT a lane multiple to exercise the padding path; the
    # tile chooser yields tl=1024 -> a 2-step grid so both v7x TCs get work.
    N = 2000
    r = jax.random.uniform(kr, (N, 1), jnp.float32, 0.5, 1.5)
    theta = jax.random.uniform(kt, (N, 1), jnp.float32, 0.0, math.pi)
    phi = jax.random.uniform(kp, (N, 1), jnp.float32, 0.0, 2.0 * math.pi)

    params = init_params(wkeys)

    out = jax.block_until_ready(harmonics_nn(r, theta, phi, params))

    ref = reference(r, theta, phi, params)
    np.testing.assert_allclose(np.asarray(out), np.asarray(ref), rtol=1e-5, atol=1e-5)
    assert out.shape == (N, 1)

    print("KERNEL_OK")
</pallas_src>

<mosaic_0001>
module attributes {stable_mosaic.version = 11 : i64} {
  func.func @harmonics_kernel(%arg0: i32, %arg1: memref<2x1024xf32, #tpu.memory_space<vmem>>, %arg2: memref<32x128xf32, #tpu.memory_space<vmem>>, %arg3: memref<1x1024xf32, #tpu.memory_space<vmem>>) attributes {dimension_semantics = [#tpu.dimension_semantics<parallel>], iteration_bounds = array<i64: 2>, scalar_prefetch = 0 : i64, scratch_operands = 0 : i64, tpu.core_type = #tpu.core_type<tc>, window_params = [{transform_indices = @transform_0, window_bounds = array<i64: 2, 1024>}, {pipeline_mode = #tpu.pipeline_mode<synchronous>, transform_indices = @transform_1, window_bounds = array<i64: 32, 128>}, {transform_indices = @transform_2, window_bounds = array<i64: 1, 1024>}]} {
    %c0 = arith.constant 0 : index
    %c0_0 = arith.constant 0 : index
    %0 = vector.load %arg1[%c0, %c0_0] : memref<2x1024xf32, #tpu.memory_space<vmem>>, vector<1x1024xf32>
    %c1 = arith.constant 1 : index
    %c0_1 = arith.constant 0 : index
    %1 = vector.load %arg1[%c1, %c0_1] : memref<2x1024xf32, #tpu.memory_space<vmem>>, vector<1x1024xf32>
    %c0_2 = arith.constant 0 : index
    %c0_3 = arith.constant 0 : index
    %2 = vector.load %arg2[%c0_2, %c0_3] : memref<32x128xf32, #tpu.memory_space<vmem>>, vector<32x128xf32>
    %3 = vector.extract_strided_slice %2 {offsets = [0, 0], sizes = [32, 1], strides = [1, 1]} : vector<32x128xf32> to vector<32x1xf32>
    %4 = vector.extract_strided_slice %2 {offsets = [0, 1], sizes = [32, 1], strides = [1, 1]} : vector<32x128xf32> to vector<32x1xf32>
    %5 = vector.extract_strided_slice %2 {offsets = [0, 2], sizes = [32, 1], strides = [1, 1]} : vector<32x128xf32> to vector<32x1xf32>
    %6 = vector.extract_strided_slice %2 {offsets = [0, 3], sizes = [32, 1], strides = [1, 1]} : vector<32x128xf32> to vector<32x1xf32>
    %7 = vector.extract_strided_slice %2 {offsets = [0, 4], sizes = [32, 32], strides = [1, 1]} : vector<32x128xf32> to vector<32x32xf32>
    %8 = vector.extract_strided_slice %2 {offsets = [0, 36], sizes = [32, 32], strides = [1, 1]} : vector<32x128xf32> to vector<32x32xf32>
    %9 = vector.broadcast %3 : vector<32x1xf32> to vector<32x1024xf32>
    %10 = vector.broadcast %0 : vector<1x1024xf32> to vector<32x1024xf32>
    %11 = arith.mulf %9, %10 : vector<32x1024xf32>
    %12 = vector.broadcast %4 : vector<32x1xf32> to vector<32x1024xf32>
    %13 = arith.addf %11, %12 : vector<32x1024xf32>
    %14 = math.tanh %13 : vector<32x1024xf32>
    %cst = arith.constant dense<0.000000e+00> : vector<32x1024xf32>
    %15 = tpu.matmul %7, %14, %cst {dimension_numbers = #tpu.dot_dimension_numbers<[1], [0], [0], [1], [0, 0, 1, 1], [], []>} : vector<32x32xf32>, vector<32x1024xf32>, vector<32x1024xf32> -> vector<32x1024xf32>
    %16 = vector.broadcast %5 : vector<32x1xf32> to vector<32x1024xf32>
    %17 = arith.addf %15, %16 : vector<32x1024xf32>
    %18 = math.tanh %17 : vector<32x1024xf32>
    %cst_4 = arith.constant dense<0.000000e+00> : vector<32x1024xf32>
    %19 = tpu.matmul %8, %18, %cst_4 {dimension_numbers = #tpu.dot_dimension_numbers<[1], [0], [0], [1], [0, 0, 1, 1], [], []>} : vector<32x32xf32>, vector<32x1024xf32>, vector<32x1024xf32> -> vector<32x1024xf32>
    %20 = vector.broadcast %6 : vector<32x1xf32> to vector<32x1024xf32>
    %21 = arith.addf %19, %20 : vector<32x1024xf32>
    %22 = math.cos %1 : vector<1x1024xf32>
    %cst_5 = arith.constant 1.000000e+00 : f32
    %23 = vector.broadcast %cst_5 : f32 to vector<1x1024xf32>
    %24 = vector.extract_strided_slice %21 {offsets = [0, 0], sizes = [1, 1024], strides = [1, 1]} : vector<32x1024xf32> to vector<1x1024xf32>
    %25 = arith.mulf %24, %23 : vector<1x1024xf32>
    %26 = vector.extract_strided_slice %21 {offsets = [1, 0], sizes = [1, 1024], strides = [1, 1]} : vector<32x1024xf32> to vector<1x1024xf32>
    %27 = arith.mulf %26, %22 : vector<1x1024xf32>
    %28 = arith.addf %25, %27 : vector<1x1024xf32>
    %cst_6 = arith.constant 3.000000e+00 : f32
    %29 = vector.broadcast %cst_6 : f32 to vector<1x1024xf32>
    %30 = arith.mulf %29, %22 : vector<1x1024xf32>
    %31 = arith.mulf %30, %22 : vector<1x1024xf32>
    %cst_7 = arith.constant 1.000000e+00 : f32
    %32 = vector.broadcast %cst_7 : f32 to vector<1x1024xf32>
    %33 = arith.mulf %32, %23 : vector<1x1024xf32>
    %34 = arith.subf %31, %33 : vector<1x1024xf32>
    %cst_8 = arith.constant 5.000000e-01 : f32
    %35 = vector.broadcast %cst_8 : f32 to vector<1x1024xf32>
    %36 = arith.mulf %34, %35 : vector<1x1024xf32>
    %37 = vector.extract_strided_slice %21 {offsets = [2, 0], sizes = [1, 1024], strides = [1, 1]} : vector<32x1024xf32> to vector<1x1024xf32>
    %38 = arith.mulf %37, %36 : vector<1x1024xf32>
    %39 = arith.addf %28, %38 : vector<1x1024xf32>
    %cst_9 = arith.constant 5.000000e+00 : f32
    %40 = vector.broadcast %cst_9 : f32 to vector<1x1024xf32>
    %41 = arith.mulf %40, %22 : vector<1x1024xf32>
    %42 = arith.mulf %41, %36 : vector<1x1024xf32>
    %cst_10 = arith.constant 2.000000e+00 : f32
    %43 = vector.broadcast %cst_10 : f32 to vector<1x1024xf32>
    %44 = arith.mulf %43, %22 : vector<1x1024xf32>
    %45 = arith.subf %42, %44 : vector<1x1024xf32>
    %cst_11 = arith.constant 0.333333343 : f32
    %46 = vector.broadcast %cst_11 : f32 to vector<1x1024xf32>
    %47 = arith.mulf %45, %46 : vector<1x1024xf32>
    %48 = vector.extract_strided_slice %21 {offsets = [3, 0], sizes = [1, 1024], strides = [1, 1]} : vector<32x1024xf32> to vector<1x1024xf32>
    %49 = arith.mulf %48, %47 : vector<1x1024xf32>
    %50 = arith.addf %39, %49 : vector<1x1024xf32>
    %cst_12 = arith.constant 7.000000e+00 : f32
    %51 = vector.broadcast %cst_12 : f32 to vector<1x1024xf32>
    %52 = arith.mulf %51, %22 : vector<1x1024xf32>
    %53 = arith.mulf %52, %47 : vector<1x1024xf32>
    %cst_13 = arith.constant 3.000000e+00 : f32
    %54 = vector.broadcast %cst_13 : f32 to vector<1x1024xf32>
    %55 = arith.mulf %54, %36 : vector<1x1024xf32>
    %56 = arith.subf %53, %55 : vector<1x1024xf32>
    %cst_14 = arith.constant 2.500000e-01 : f32
    %57 = vector.broadcast %cst_14 : f32 to vector<1x1024xf32>
    %58 = arith.mulf %56, %57 : vector<1x1024xf32>
    %59 = vector.extract_strided_slice %21 {offsets = [4, 0], sizes = [1, 1024], strides = [1, 1]} : vector<32x1024xf32> to vector<1x1024xf32>
    %60 = arith.mulf %59, %58 : vector<1x1024xf32>
    %61 = arith.addf %50, %60 : vector<1x1024xf32>
    %cst_15 = arith.constant 9.000000e+00 : f32
    %62 = vector.broadcast %cst_15 : f32 to vector<1x1024xf32>
    %63 = arith.mulf %62, %22 : vector<1x1024xf32>
    %64 = arith.mulf %63, %58 : vector<1x1024xf32>
    %cst_16 = arith.constant 4.000000e+00 : f32
    %65 = vector.broadcast %cst_16 : f32 to vector<1x1024xf32>
    %66 = arith.mulf %65, %47 : vector<1x1024xf32>
    %67 = arith.subf %64, %66 : vector<1x1024xf32>
    %cst_17 = arith.constant 2.000000e-01 : f32
    %68 = vector.broadcast %cst_17 : f32 to vector<1x1024xf32>
    %69 = arith.mulf %67, %68 : vector<1x1024xf32>
    %70 = vector.extract_strided_slice %21 {offsets = [5, 0], sizes = [1, 1024], strides = [1, 1]} : vector<32x1024xf32> to vector<1x1024xf32>
    %71 = arith.mulf %70, %69 : vector<1x1024xf32>
    %72 = arith.addf %61, %71 : vector<1x1024xf32>
    %cst_18 = arith.constant 1.100000e+01 : f32
    %73 = vector.broadcast %cst_18 : f32 to vector<1x1024xf32>
    %74 = arith.mulf %73, %22 : vector<1x1024xf32>
    %75 = arith.mulf %74, %69 : vector<1x1024xf32>
    %cst_19 = arith.constant 5.000000e+00 : f32
    %76 = vector.broadcast %cst_19 : f32 to vector<1x1024xf32>
    %77 = arith.mulf %76, %58 : vector<1x1024xf32>
    %78 = arith.subf %75, %77 : vector<1x1024xf32>
    %cst_20 = arith.constant 0.166666672 : f32
    %79 = vector.broadcast %cst_20 : f32 to vector<1x1024xf32>
    %80 = arith.mulf %78, %79 : vector<1x1024xf32>
    %81 = vector.extract_strided_slice %21 {offsets = [6, 0], sizes = [1, 1024], strides = [1, 1]} : vector<32x1024xf32> to vector<1x1024xf32>
    %82 = arith.mulf %81, %80 : vector<1x1024xf32>
    %83 = arith.addf %72, %82 : vector<1x1024xf32>
    %cst_21 = arith.constant 1.300000e+01 : f32
    %84 = vector.broadcast %cst_21 : f32 to vector<1x1024xf32>
    %85 = arith.mulf %84, %22 : vector<1x1024xf32>
    %86 = arith.mulf %85, %80 : vector<1x1024xf32>
    %cst_22 = arith.constant 6.000000e+00 : f32
    %87 = vector.broadcast %cst_22 : f32 to vector<1x1024xf32>
    %88 = arith.mulf %87, %69 : vector<1x1024xf32>
    %89 = arith.subf %86, %88 : vector<1x1024xf32>
    %cst_23 = arith.constant 0.142857149 : f32
    %90 = vector.broadcast %cst_23 : f32 to vector<1x1024xf32>
    %91 = arith.mulf %89, %90 : vector<1x1024xf32>
    %92 = vector.extract_strided_slice %21 {offsets = [7, 0], sizes = [1, 1024], strides = [1, 1]} : vector<32x1024xf32> to vector<1x1024xf32>
    %93 = arith.mulf %92, %91 : vector<1x1024xf32>
    %94 = arith.addf %83, %93 : vector<1x1024xf32>
    %cst_24 = arith.constant 1.500000e+01 : f32
    %95 = vector.broadcast %cst_24 : f32 to vector<1x1024xf32>
    %96 = arith.mulf %95, %22 : vector<1x1024xf32>
    %97 = arith.mulf %96, %91 : vector<1x1024xf32>
    %cst_25 = arith.constant 7.000000e+00 : f32
    %98 = vector.broadcast %cst_25 : f32 to vector<1x1024xf32>
    %99 = arith.mulf %98, %80 : vector<1x1024xf32>
    %100 = arith.subf %97, %99 : vector<1x1024xf32>
    %cst_26 = arith.constant 1.250000e-01 : f32
    %101 = vector.broadcast %cst_26 : f32 to vector<1x1024xf32>
    %102 = arith.mulf %100, %101 : vector<1x1024xf32>
    %103 = vector.extract_strided_slice %21 {offsets = [8, 0], sizes = [1, 1024], strides = [1, 1]} : vector<32x1024xf32> to vector<1x1024xf32>
    %104 = arith.mulf %103, %102 : vector<1x1024xf32>
    %105 = arith.addf %94, %104 : vector<1x1024xf32>
    %cst_27 = arith.constant 1.700000e+01 : f32
    %106 = vector.broadcast %cst_27 : f32 to vector<1x1024xf32>
    %107 = arith.mulf %106, %22 : vector<1x1024xf32>
    %108 = arith.mulf %107, %102 : vector<1x1024xf32>
    %cst_28 = arith.constant 8.000000e+00 : f32
    %109 = vector.broadcast %cst_28 : f32 to vector<1x1024xf32>
    %110 = arith.mulf %109, %91 : vector<1x1024xf32>
    %111 = arith.subf %108, %110 : vector<1x1024xf32>
    %cst_29 = arith.constant 0.111111112 : f32
    %112 = vector.broadcast %cst_29 : f32 to vector<1x1024xf32>
    %113 = arith.mulf %111, %112 : vector<1x1024xf32>
    %114 = vector.extract_strided_slice %21 {offsets = [9, 0], sizes = [1, 1024], strides = [1, 1]} : vector<32x1024xf32> to vector<1x1024xf32>
    %115 = arith.mulf %114, %113 : vector<1x1024xf32>
    %116 = arith.addf %105, %115 : vector<1x1024xf32>
    %c0_30 = arith.constant 0 : index
    %c0_31 = arith.constant 0 : index
    %117 = vector.load %arg3[%c0_30, %c0_31] : memref<1x1024xf32, #tpu.memory_space<vmem>>, vector<1x1024xf32>
    tpu.vector_store %arg3[%c0_30, %c0_31], %116 {strides = array<i32>} : memref<1x1024xf32, #tpu.memory_space<vmem>>, vector<1x1024xf32>,
    return
  }
  func.func @transform_0(%arg0: i32) -> (i32, i32) {
    %c0_i32 = arith.constant 0 : i32
    %c0_i32_0 = arith.constant 0 : i32
    return %c0_i32, %arg0 : i32, i32
  }
  func.func @transform_1(%arg0: i32) -> (i32, i32) {
    %c0_i32 = arith.constant 0 : i32
    %c0_i32_0 = arith.constant 0 : i32
    %c0_i32_1 = arith.constant 0 : i32
    return %c0_i32, %c0_i32_0 : i32, i32
  }
  func.func @transform_2(%arg0: i32) -> (i32, i32) {
    %c0_i32 = arith.constant 0 : i32
    %c0_i32_0 = arith.constant 0 : i32
    return %c0_i32, %arg0 : i32, i32
  }
}

</mosaic_0001>

<llo_original>
// kernel: tpu_custom_call.1
$region0: #{tpu_custom_call.1}
  #allocation0 [shape = 'u32[]', space=smem, size = 0x4, offset = 0x4, fixed_abs, tag = 'smem constant byte address 0x4 - core index']
  #allocation1 [shape = 'u32[144,128]{1,0:T(1,128)}', space=vmem, size = 0x12000, scoped, tag = 'internal scratch']
  %s0 = inlined_call_operand.hbm [shape: f32[2,2048], index: 0, kind: input, shape index: {}]
  %s1 = inlined_call_operand.hbm [shape: f32[32,128], index: 1, kind: input, shape index: {}]
  %s2 = inlined_call_operand.hbm [shape: f32[1,2048], index: 2, kind: output, shape index: {}]
  %s3 = sld [smem:[#allocation0]]
  $region49: #{tpu_custom_call.1} parent=0
    _
  %s5 = ssub.s32 1, %s3
  %s6 = scalar_select 0, %s5, %s3
  $region1: #{tpu_custom_call.1} parent=0
    #allocation2 [shape = 'u8[16384]{0}', space=vmem, size = 0x4000, scoped, tag = 'input window, operand 0']
    #allocation3 [shape = 's32[2]{0}', space=sflag, size = 0x8, scoped, tag = 'scoped memory for tpu_custom_call.1']
    #allocation4 [shape = 's32[2]{0}', space=sflag, size = 0x8, scoped, tag = 'scoped memory for tpu_custom_call.1']
    #allocation5 [shape = 'u8[16384]{0}', space=vmem, size = 0x4000, scoped, tag = 'input window, operand 1, single buffered']
    #allocation6 [shape = 's32[1]{0}', space=sflag, size = 0x4, scoped, tag = 'scoped memory for tpu_custom_call.1']
    #allocation7 [shape = 'u8[8192]{0}', space=vmem, size = 0x2000, scoped, tag = 'output window, operand 0']
    %7 = vsyncpa [#allocation3], 0
    %s8 = scalar_lea.sflag [#allocation3], 1
    %9 = vsyncpa %s8, 0
    %10 = vsyncpa [#allocation6], 0
    %11 = vsyncpa [#allocation4], 0
    %s12 = scalar_lea.sflag [#allocation4], 1
    %13 = vsyncpa %s12, 0
    loop: start=0, step=1, limit=4
    $region2: #{tpu_custom_call.1} parent=1 // loop_pre_header
      _
    $region3: #{tpu_custom_call.1} parent=1 // loop_header
      %s15 = sphi 0, %s19
      %p16 = scmp.ge.s32.totalorder %s15, 4
      %s25 = sphi 0, %s27
      %s28 = sphi 0, %s25
      %s29 = sphi 0, %s28
      %s45 = sphi 0, %s29
      %s49 = sphi 0, %s49
      %s51 = sphi 0, %s49
      %s52 = sphi 0, %s51
      %s66 = sphi 0, %s52
      %s72 = sphi 0, %s74
      %s75 = sphi 0, %s72
      %s76 = sphi 0, %s75
      %s92 = sphi 0, %s76
    $region4: #{tpu_custom_call.1} parent=1 // loop_header_branch
      %18 = sbr.rel (%p16) target = $region8
    $region5: #{tpu_custom_call.1} parent=1 // loop_body
      %s20 = ssub.s32 %s15, 1
      %s21 = ssub.s32 %s15, 2
      %s22 = sadd.s32 %s15, 1
      %s23 = ssub.s32 %s15, %s22
      %p24 = scmp.eq.s32.totalorder %s23, 0
      %s26 = sadd.s32 %s25, 1
      %s27 = scalar_select %p24, %s25, %s26
      %p30 = pneg %p24
      %p31 = scmp.eq.s32.totalorder %s15, 1
      %p32 = por %p30, %p31
      %p33 = scmp.ne.s32.totalorder %s25, %s28
      %p34 = scmp.eq.s32.totalorder %s15, 0
      %p35 = por %p33, %p34
      %p36 = scmp.ne.s32.totalorder %s25, %s28
      %p37 = scmp.eq.s32.totalorder %s20, 1
      %p38 = por %p36, %p37
      %p39 = scmp.ne.s32.totalorder %s28, %s29
      %p40 = scmp.eq.s32.totalorder %s20, 0
      %p41 = por %p39, %p40
      %p42 = scmp.ne.s32.totalorder %s28, %s29
      %p43 = scmp.eq.s32.totalorder %s21, 1
      %p44 = por %p42, %p43
      %p46 = scmp.ne.s32.totalorder %s29, %s45
      %p47 = scmp.eq.s32.totalorder %s21, 0
      %p48 = por %p46, %p47
      %s50 = sadd.s32 %s49, 1
      %p53 = scmp.eq.s32.totalorder %s15, 1
      %p54 = scmp.ne.s32.totalorder %s49, %s51
      %p55 = scmp.eq.s32.totalorder %s15, 0
      %p56 = por %p54, %p55
      %p57 = scmp.ne.s32.totalorder %s49, %s51
      %p58 = scmp.eq.s32.totalorder %s20, 1
      %p59 = por %p57, %p58
      %p60 = scmp.ne.s32.totalorder %s51, %s52
      %p61 = scmp.eq.s32.totalorder %s20, 0
      %p62 = por %p60, %p61
      %p63 = scmp.ne.s32.totalorder %s51, %s52
      %p64 = scmp.eq.s32.totalorder %s21, 1
      %p65 = por %p63, %p64
      %p67 = scmp.ne.s32.totalorder %s52, %s66
      %p68 = scmp.eq.s32.totalorder %s21, 0
      %p69 = por %p67, %p68
      %s70 = ssub.s32 %s15, %s22
      %p71 = scmp.eq.s32.totalorder %s70, 0
      %s73 = sadd.s32 %s72, 1
      %s74 = scalar_select %p71, %s72, %s73
      %p77 = pneg %p71
      %p78 = scmp.eq.s32.totalorder %s15, 1
      %p79 = por %p77, %p78
      %p80 = scmp.ne.s32.totalorder %s72, %s75
      %p81 = scmp.eq.s32.totalorder %s15, 0
      %p82 = por %p80, %p81
      %p83 = scmp.ne.s32.totalorder %s72, %s75
      %p84 = scmp.eq.s32.totalorder %s20, 1
      %p85 = por %p83, %p84
      %p86 = scmp.ne.s32.totalorder %s75, %s76
      %p87 = scmp.eq.s32.totalorder %s20, 0
      %p88 = por %p86, %p87
      %p89 = scmp.ne.s32.totalorder %s75, %s76
      %p90 = scmp.eq.s32.totalorder %s21, 1
      %p91 = por %p89, %p90
      %p93 = scmp.ne.s32.totalorder %s76, %s92
      %p94 = scmp.eq.s32.totalorder %s21, 0
      %p95 = por %p93, %p94
      %p96 = scmp.le.s32.totalorder 1, %s15
      %p97 = scmp.lt.s32.totalorder %s15, 3
      %p98 = pnand %p96, %p97
      %p99 = pneg %p98
      // Predicated region
      $region9: #{tpu_custom_call.1} parent=5 // pred_check
        _
      $region10: #{tpu_custom_call.1} parent=5 // pred_check_branch
        %101 = sbr.rel (%p98) target = $region12
      $region11: #{tpu_custom_call.1} parent=5 // pred_region
        %s102 = ssub.s32 %s15, 1
        // Predicated region
        $region13: #{tpu_custom_call.1} parent=11 // pred_check
          %p103 = pneg %p62
        $region14: #{tpu_custom_call.1} parent=11 // pred_check_branch
          %105 = sbr.rel (%p103) target = $region16
        $region15: #{tpu_custom_call.1} parent=11 // pred_region
          %s107 = ssub.s32 512, 512
          %108 = vsyncadd [#allocation6], %s107
          %s109 = sshll.u32 [#allocation5], 4
          %s110 = int_to_ptr.vmem [resolvable:$true] %s109
          %115 = dma.hbm_to_vmem [thread:$0]  %s1, 512, %s110, [#allocation6], 128, 128, 8
        $region16: #{tpu_custom_call.1} parent=11 // pred_fallthru
          _
      $region12: #{tpu_custom_call.1} parent=5 // pred_fallthru
        _
      %p116 = scmp.lt.s32.totalorder %s15, 2
      // Predicated region
      $region17: #{tpu_custom_call.1} parent=5 // pred_check
        %p117 = pneg %p116
      $region18: #{tpu_custom_call.1} parent=5 // pred_check_branch
        %119 = sbr.rel (%p117) target = $region20
      $region19: #{tpu_custom_call.1} parent=5 // pred_region
        // Predicated region
        $region21: #{tpu_custom_call.1} parent=19 // pred_check
          %p120 = pneg %p35
        $region22: #{tpu_custom_call.1} parent=19 // pred_check_branch
          %122 = sbr.rel (%p120) target = $region24
        $region23: #{tpu_custom_call.1} parent=19 // pred_region
          %s123 = sand.u32 %s25, 1
          %s124 = scalar_lea.sflag [#allocation3], %s123
          %s125 = sand.u32 %s25, 1
          %s126 = smul.addr %s125, 16
          %s127 = scalar_lea.vmem [#allocation2], %s126
          %s128 = smul.u32 8, %s15
          %s130 = ssub.s32 256, 256
          %131 = vsyncadd %s124, %s130
          %s132 = smul.addr %s128, 32
          %s133 = scalar_lea.hbm %s0, %s132
          %s135 = sshll.u32 %s127, 4
          %s136 = int_to_ptr.vmem [resolvable:$true] %s135
          %138 = dma.hbm_to_vmem [thread:$0]  %s133, 256, %s136, %s124
        $region24: #{tpu_custom_call.1} parent=19 // pred_fallthru
          _
      $region20: #{tpu_custom_call.1} parent=5 // pred_fallthru
        _
      %p139 = scmp.le.s32.totalorder 1, %s15
      %p140 = scmp.lt.s32.totalorder %s15, 3
      %p141 = pnand %p139, %p140
      %p142 = pneg %p141
      // Predicated region
      $region25: #{tpu_custom_call.1} parent=5 // pred_check
        _
      $region26: #{tpu_custom_call.1} parent=5 // pred_check_branch
        %144 = sbr.rel (%p141) target = $region28
      $region27: #{tpu_custom_call.1} parent=5 // pred_region
        %s145 = ssub.s32 %s15, 1
        %s146 = sand.u32 %s28, 1
        %s147 = scalar_lea.sflag [#allocation3], %s146
        %s148 = sand.u32 %s28, 1
        %s149 = smul.addr %s148, 16
        %s150 = scalar_lea.vmem [#allocation2], %s149
        // Predicated region
        $region29: #{tpu_custom_call.1} parent=27 // pred_check
          %p151 = pneg %p41
        $region30: #{tpu_custom_call.1} parent=27 // pred_check_branch
          %153 = sbr.rel (%p151) target = $region32
        $region31: #{tpu_custom_call.1} parent=27 // pred_region
          %154 = dma.done %s147, 256
        $region32: #{tpu_custom_call.1} parent=27 // pred_fallthru
          _
        // Predicated region
        $region33: #{tpu_custom_call.1} parent=27 // pred_check
          %p155 = pneg %p62
        $region34: #{tpu_custom_call.1} parent=27 // pred_check_branch
          %157 = sbr.rel (%p155) target = $region36
        $region35: #{tpu_custom_call.1} parent=27 // pred_region
          %158 = dma.done [#allocation6], 512
        $region36: #{tpu_custom_call.1} parent=27 // pred_fallthru
          _
        %s159 = sand.u32 %s28, 1
        %s160 = scalar_lea.sflag [#allocation3], %s159
        %s161 = sand.u32 %s28, 1
        %s162 = smul.addr %s161, 16
        %s163 = scalar_lea.vmem [#allocation2], %s162
        %p164 = pneg %p41
        %p165 = pneg %p38
        %p166 = pneg %p62
        %p167 = pneg %p59
        %p168 = pneg %p88
        %p169 = pneg %p85
        %s170 = sand.u32 %s75, 1
        %s171 = scalar_lea.sflag [#allocation4], %s170
        %s172 = sand.u32 %s75, 1
        %s173 = smul.addr %s172, 8
        %s174 = scalar_lea.vmem [#allocation7], %s173
        %s175 = smul.u32 8, %s20
        %s176 = smul.u32 8, %s20
        %v177 = vld [vmem:[%s150] ss:$2 sm:$0xff]
        %s178 = scalar_lea.vmem %s150, 1 [#allocation2]
        %v179 = vld [vmem:[%s178] ss:$2 sm:$0xff]
        %v180 = vld [vmem:[#allocation5] sm:$0xff]
        %v181 = vld [vmem:[#allocation5 + $0x8] sm:$0xff]
        %v182 = vld [vmem:[#allocation5 + $0x10] sm:$0xff]
        %v183 = vld [vmem:[#allocation5 + $0x18] sm:$0xff]
        %185 = vset.pattern.permute.xlu0 0
        %186 = vperm.xlu0 %185, %v180
        %v187 = vpop.permute.xlu0 %186
        %190 = vset.pattern.permute.xlu0 0
        %191 = vperm.xlu0 %190, %v181
        %v192 = vpop.permute.xlu0 %191
        %195 = vset.pattern.permute.xlu0 0
        %196 = vperm.xlu0 %195, %v182
        %v197 = vpop.permute.xlu0 %196
        %200 = vset.pattern.permute.xlu0 0
        %201 = vperm.xlu0 %200, %v183
        %v202 = vpop.permute.xlu0 %201
        %v205 = vlaneseq
        %v206 = vshrl.u32 %v205, 7
        %v207 = vsub.s32 0, %v206
        %v208 = vrot.slane %v177, %v207
        %v209 = vlaneseq
        %v210 = vshrl.u32 %v209, 7
        %v211 = vsub.s32 1, %v210
        %v212 = vrot.slane %v177, %v211
        %v213 = vlaneseq
        %v214 = vshrl.u32 %v213, 7
        %v215 = vsub.s32 2, %v214
        %v216 = vrot.slane %v177, %v215
        %v217 = vlaneseq
        %v218 = vshrl.u32 %v217, 7
        %v219 = vsub.s32 3, %v218
        %v220 = vrot.slane %v177, %v219
        %v221 = vlaneseq
        %v222 = vshrl.u32 %v221, 7
        %v223 = vsub.s32 4, %v222
        %v224 = vrot.slane %v177, %v223
        %v225 = vlaneseq
        %v226 = vshrl.u32 %v225, 7
        %v227 = vsub.s32 5, %v226
        %v228 = vrot.slane %v177, %v227
        %v229 = vlaneseq
        %v230 = vshrl.u32 %v229, 7
        %v231 = vsub.s32 6, %v230
        %v232 = vrot.slane %v177, %v231
        %v233 = vlaneseq
        %v234 = vshrl.u32 %v233, 7
        %v235 = vsub.s32 7, %v234
        %v236 = vrot.slane %v177, %v235
        %v245 = vmul.f32 %v187, %v208
        %v246 = vmul.f32 %v187, %v212
        %v247 = vmul.f32 %v187, %v216
        %v248 = vmul.f32 %v187, %v220
        %v249 = vmul.f32 %v187, %v224
        %v250 = vmul.f32 %v187, %v228
        %v251 = vmul.f32 %v187, %v232
        %v252 = vmul.f32 %v187, %v236
        %v253 = vmul.f32 %v192, %v208
        %v254 = vmul.f32 %v192, %v212
        %v255 = vmul.f32 %v192, %v216
        %v256 = vmul.f32 %v192, %v220
        %v257 = vmul.f32 %v192, %v224
        %v258 = vmul.f32 %v192, %v228
        %v259 = vmul.f32 %v192, %v232
        %v260 = vmul.f32 %v192, %v236
        %v261 = vmul.f32 %v197, %v208
        %v262 = vmul.f32 %v197, %v212
        %v263 = vmul.f32 %v197, %v216
        %v264 = vmul.f32 %v197, %v220
        %v265 = vmul.f32 %v197, %v224
        %v266 = vmul.f32 %v197, %v228
        %v267 = vmul.f32 %v197, %v232
        %v268 = vmul.f32 %v197, %v236
        %v269 = vmul.f32 %v202, %v208
        %v270 = vmul.f32 %v202, %v212
        %v271 = vmul.f32 %v202, %v216
        %v272 = vmul.f32 %v202, %v220
        %v273 = vmul.f32 %v202, %v224
        %v274 = vmul.f32 %v202, %v228
        %v275 = vmul.f32 %v202, %v232
        %v276 = vmul.f32 %v202, %v236
        %277 = vset.pattern.permute.xlu0 1
        %278 = vperm.xlu0 %277, %v180
        %v279 = vpop.permute.xlu0 %278
        %281 = vset.pattern.permute.xlu0 1
        %282 = vperm.xlu0 %281, %v181
        %v283 = vpop.permute.xlu0 %282
        %285 = vset.pattern.permute.xlu0 1
        %286 = vperm.xlu0 %285, %v182
        %v287 = vpop.permute.xlu0 %286
        %289 = vset.pattern.permute.xlu0 1
        %290 = vperm.xlu0 %289, %v183
        %v291 = vpop.permute.xlu0 %290
        %v293 = vadd.f32 %v245, %v279
        %v294 = vadd.f32 %v246, %v279
        %v295 = vadd.f32 %v247, %v279
        %v296 = vadd.f32 %v248, %v279
        %v297 = vadd.f32 %v249, %v279
        %v298 = vadd.f32 %v250, %v279
        %v299 = vadd.f32 %v251, %v279
        %v300 = vadd.f32 %v252, %v279
        %v301 = vadd.f32 %v253, %v283
        %v302 = vadd.f32 %v254, %v283
        %v303 = vadd.f32 %v255, %v283
        %v304 = vadd.f32 %v256, %v283
        %v305 = vadd.f32 %v257, %v283
        %v306 = vadd.f32 %v258, %v283
        %v307 = vadd.f32 %v259, %v283
        %v308 = vadd.f32 %v260, %v283
        %v309 = vadd.f32 %v261, %v287
        %v310 = vadd.f32 %v262, %v287
        %v311 = vadd.f32 %v263, %v287
        %v312 = vadd.f32 %v264, %v287
        %v313 = vadd.f32 %v265, %v287
        %v314 = vadd.f32 %v266, %v287
        %v315 = vadd.f32 %v267, %v287
        %v316 = vadd.f32 %v268, %v287
        %v317 = vadd.f32 %v269, %v291
        %v318 = vadd.f32 %v270, %v291
        %v319 = vadd.f32 %v271, %v291
        %v320 = vadd.f32 %v272, %v291
        %v321 = vadd.f32 %v273, %v291
        %v322 = vadd.f32 %v274, %v291
        %v323 = vadd.f32 %v275, %v291
        %v324 = vadd.f32 %v276, %v291
        %v325 = vtanh.pop %v293
        %v326 = vtanh.pop %v294
        %v327 = vtanh.pop %v295
        %v328 = vtanh.pop %v296
        %v329 = vtanh.pop %v297
        %v330 = vtanh.pop %v298
        %v331 = vtanh.pop %v299
        %v332 = vtanh.pop %v300
        %v333 = vtanh.pop %v301
        %v334 = vtanh.pop %v302
        %v335 = vtanh.pop %v303
        %v336 = vtanh.pop %v304
        %v337 = vtanh.pop %v305
        %v338 = vtanh.pop %v306
        %v339 = vtanh.pop %v307
        %v340 = vtanh.pop %v308
        %v341 = vtanh.pop %v309
        %v342 = vtanh.pop %v310
        %v343 = vtanh.pop %v311
        %v344 = vtanh.pop %v312
        %v345 = vtanh.pop %v313
        %v346 = vtanh.pop %v314
        %v347 = vtanh.pop %v315
        %v348 = vtanh.pop %v316
        %v349 = vtanh.pop %v317
        %v350 = vtanh.pop %v318
        %v351 = vtanh.pop %v319
        %v352 = vtanh.pop %v320
        %v353 = vtanh.pop %v321
        %v354 = vtanh.pop %v322
        %v355 = vtanh.pop %v323
        %v356 = vtanh.pop %v324
        %357 = vset.pattern.permute.xlu0 2
        %358 = vperm.xlu0 %357, %v180
        %v359 = vpop.permute.xlu0 %358
        %361 = vset.pattern.permute.xlu0 2
        %362 = vperm.xlu0 %361, %v181
        %v363 = vpop.permute.xlu0 %362
        %365 = vset.pattern.permute.xlu0 2
        %366 = vperm.xlu0 %365, %v182
        %v367 = vpop.permute.xlu0 %366
        %369 = vset.pattern.permute.xlu0 2
        %370 = vperm.xlu0 %369, %v183
        %v371 = vpop.permute.xlu0 %370
        %373 = vrot.lane.b32.xlu0 %v180, 124
        %v374 = vpop.permute.xlu0 %373
        %375 = vrot.lane.b32.xlu0 %v181, 124
        %v376 = vpop.permute.xlu0 %375
        %377 = vrot.lane.b32.xlu0 %v182, 124
        %v378 = vpop.permute.xlu0 %377
        %379 = vrot.lane.b32.xlu0 %v183, 124
        %v380 = vpop.permute.xlu0 %379
        %vm381 = vcmask 261120
        %v382 = vsel %vm381, %v374, 0
        %v384 = vsel %vm381, %v376, 0
        %v386 = vsel %vm381, %v378, 0
        %v388 = vsel %vm381, %v380, 0
        %390 = vmatprep.subr.mxu0 %v326
        %391 = vmatpush1.msra.mxu0 %v325
        %392 = vmatprep.subr.mxu0 %v334
        %393 = vmatpush1.msra.mxu0 %v333
        %394 = vmatprep.subr.mxu0 %v342
        %395 = vmatpush1.msra.mxu0 %v341
        %396 = vmatprep.subr.mxu0 %v350
        %397 = vmatpush1.msra.mxu0 %v349
        %398 = vmatprep.subr.mxu0 0.0
        %399 = vmatpush1.msra.mxu0 0.0
        %400 = vmatprep.subr.mxu0 0.0
        %401 = vmatpush1.msra.mxu0 0.0
        %402 = vmatprep.subr.mxu0 0.0
        %403 = vmatpush1.msra.mxu0 0.0
        %404 = vmatprep.subr.mxu0 0.0
        %405 = vmatpush1.msra.mxu0 0.0
        %406 = vmatprep.subr.mxu0 0.0
        %407 = vmatpush1.msra.mxu0 0.0
        %408 = vmatprep.subr.mxu0 0.0
        %409 = vmatpush1.msra.mxu0 0.0
        %410 = vmatprep.subr.mxu0 0.0
        %411 = vmatpush1.msra.mxu0 0.0
        %412 = vmatprep.subr.mxu0 0.0
        %413 = vmatpush1.msra.mxu0 0.0
        %414 = vmatprep.subr.mxu0 0.0
        %415 = vmatpush1.msra.mxu0 0.0
        %416 = vmatprep.subr.mxu0 0.0
        %417 = vmatpush1.msra.mxu0 0.0
        %418 = vmatprep.subr.mxu0 0.0
        %419 = vmatpush1.msra.mxu0 0.0
        %420 = vmatprep.subr.mxu0 0.0
        %421 = vmatpush1.msra.mxu0 0.0
        %422 = vmatprep.subr.mxu0 0.0
        %423 = vmatpush1.msra.mxu0 0.0
        %424 = vmatprep.subr.mxu0 0.0
        %425 = vmatpush1.msra.mxu0 0.0
        %426 = vmatprep.subr.mxu0 0.0
        %427 = vmatpush1.msra.mxu0 0.0
        %428 = vmatprep.subr.mxu0 0.0
        %429 = vmatpush1.msra.mxu0 0.0
        %430 = vmatprep.subr.mxu0 0.0
        %431 = vmatpush1.msra.mxu0 0.0
        %432 = vmatprep.subr.mxu0 0.0
        %433 = vmatpush1.msra.mxu0 0.0
        %434 = vmatprep.subr.mxu0 0.0
        %435 = vmatpush1.msra.mxu0 0.0
        %436 = vmatprep.subr.mxu0 0.0
        %437 = vmatpush1.msra.mxu0 0.0
        %438 = vmatprep.subr.mxu0 0.0
        %439 = vmatpush1.msra.mxu0 0.0
        %440 = vmatprep.subr.mxu0 0.0
        %441 = vmatpush1.msra.mxu0 0.0
        %442 = vmatprep.subr.mxu0 0.0
        %443 = vmatpush1.msra.mxu0 0.0
        %444 = vmatprep.subr.mxu0 0.0
        %445 = vmatpush1.msra.mxu0 0.0
        %446 = vmatprep.subr.mxu0 0.0
        %447 = vmatpush1.msra.mxu0 0.0
        %448 = vmatprep.subr.mxu0 0.0
        %449 = vmatpush1.msra.mxu0 0.0
        %450 = vmatprep.subr.mxu0 0.0
        %451 = vmatpush1.msra.mxu0 0.0
        %452 = vmatprep.subr.mxu0 0.0
        %453 = vmatpush1.msra.mxu0 0.0
        %454 = vmatprep.mubr.f32.mxu0 0.0
        %455 = vmatmul.mubr.f32.gmra.mrb[0].mxu0 %v382
        %v456 = vpop.f32.mrb[0].mxu0
        %v457 = vadd.f32 %v359, %v456
        %v458 = vpop.f32.mrb[0].mxu0
        %v459 = vadd.f32 %v359, %v458
        %460 = vmatprep.mubr.f32.mxu0 0.0
        %461 = vmatmul.mubr.f32.gmra.mrb[0].mxu0 %v384
        %v462 = vpop.f32.mrb[0].mxu0
        %v463 = vadd.f32 %v363, %v462
        %v464 = vpop.f32.mrb[0].mxu0
        %v465 = vadd.f32 %v363, %v464
        %466 = vmatprep.mubr.f32.mxu0 0.0
        %467 = vmatmul.mubr.f32.gmra.mrb[0].mxu0 %v386
        %v468 = vpop.f32.mrb[0].mxu0
        %v469 = vadd.f32 %v367, %v468
        %v470 = vpop.f32.mrb[0].mxu0
        %v471 = vadd.f32 %v367, %v470
        %472 = vmatprep.mubr.f32.mxu0 0.0
        %473 = vmatmul.mubr.f32.gmra.mrb[0].mxu0 %v388
        %v474 = vpop.f32.mrb[0].mxu0
        %v475 = vadd.f32 %v371, %v474
        %v476 = vpop.f32.mrb[0].mxu0
        %v477 = vadd.f32 %v371, %v476
        %478 = vdwg.mxu0
        %479 = vmatprep.subr.mxu0 %v328
        %480 = vmatpush1.msra.mxu0 %v327
        %481 = vmatprep.subr.mxu0 %v336
        %482 = vmatpush1.msra.mxu0 %v335
        %483 = vmatprep.subr.mxu0 %v344
        %484 = vmatpush1.msra.mxu0 %v343
        %485 = vmatprep.subr.mxu0 %v352
        %486 = vmatpush1.msra.mxu0 %v351
        %487 = vmatprep.subr.mxu0 0.0
        %488 = vmatpush1.msra.mxu0 0.0
        %489 = vmatprep.subr.mxu0 0.0
        %490 = vmatpush1.msra.mxu0 0.0
        %491 = vmatprep.subr.mxu0 0.0
        %492 = vmatpush1.msra.mxu0 0.0
        %493 = vmatprep.subr.mxu0 0.0
        %494 = vmatpush1.msra.mxu0 0.0
        %495 = vmatprep.subr.mxu0 0.0
        %496 = vmatpush1.msra.mxu0 0.0
        %497 = vmatprep.subr.mxu0 0.0
        %498 = vmatpush1.msra.mxu0 0.0
        %499 = vmatprep.subr.mxu0 0.0
        %500 = vmatpush1.msra.mxu0 0.0
        %501 = vmatprep.subr.mxu0 0.0
        %502 = vmatpush1.msra.mxu0 0.0
        %503 = vmatprep.subr.mxu0 0.0
        %504 = vmatpush1.msra.mxu0 0.0
        %505 = vmatprep.subr.mxu0 0.0
        %506 = vmatpush1.msra.mxu0 0.0
        %507 = vmatprep.subr.mxu0 0.0
        %508 = vmatpush1.msra.mxu0 0.0
        %509 = vmatprep.subr.mxu0 0.0
        %510 = vmatpush1.msra.mxu0 0.0
        %511 = vmatprep.subr.mxu0 0.0
        %512 = vmatpush1.msra.mxu0 0.0
        %513 = vmatprep.subr.mxu0 0.0
        %514 = vmatpush1.msra.mxu0 0.0
        %515 = vmatprep.subr.mxu0 0.0
        %516 = vmatpush1.msra.mxu0 0.0
        %517 = vmatprep.subr.mxu0 0.0
        %518 = vmatpush1.msra.mxu0 0.0
        %519 = vmatprep.subr.mxu0 0.0
        %520 = vmatpush1.msra.mxu0 0.0
        %521 = vmatprep.subr.mxu0 0.0
        %522 = vmatpush1.msra.mxu0 0.0
        %523 = vmatprep.subr.mxu0 0.0
        %524 = vmatpush1.msra.mxu0 0.0
        %525 = vmatprep.subr.mxu0 0.0
        %526 = vmatpush1.msra.mxu0 0.0
        %527 = vmatprep.subr.mxu0 0.0
        %528 = vmatpush1.msra.mxu0 0.0
        %529 = vmatprep.subr.mxu0 0.0
        %530 = vmatpush1.msra.mxu0 0.0
        %531 = vmatprep.subr.mxu0 0.0
        %532 = vmatpush1.msra.mxu0 0.0
        %533 = vmatprep.subr.mxu0 0.0
        %534 = vmatpush1.msra.mxu0 0.0
        %535 = vmatprep.subr.mxu0 0.0
        %536 = vmatpush1.msra.mxu0 0.0
        %537 = vmatprep.subr.mxu0 0.0
        %538 = vmatpush1.msra.mxu0 0.0
        %539 = vmatprep.subr.mxu0 0.0
        %540 = vmatpush1.msra.mxu0 0.0
        %541 = vmatprep.subr.mxu0 0.0
        %542 = vmatpush1.msra.mxu0 0.0
        %543 = vmatprep.mubr.f32.mxu0 0.0
        %544 = vmatmul.mubr.f32.gmra.mrb[0].mxu0 %v382
        %v545 = vpop.f32.mrb[0].mxu0
        %v546 = vadd.f32 %v359, %v545
        %v547 = vpop.f32.mrb[0].mxu0
        %v548 = vadd.f32 %v359, %v547
        %549 = vmatprep.mubr.f32.mxu0 0.0
        %550 = vmatmul.mubr.f32.gmra.mrb[0].mxu0 %v384
        %v551 = vpop.f32.mrb[0].mxu0
        %v552 = vadd.f32 %v363, %v551
        %v553 = vpop.f32.mrb[0].mxu0
        %v554 = vadd.f32 %v363, %v553
        %555 = vmatprep.mubr.f32.mxu0 0.0
        %556 = vmatmul.mubr.f32.gmra.mrb[0].mxu0 %v386
        %v557 = vpop.f32.mrb[0].mxu0
        %v558 = vadd.f32 %v367, %v557
        %v559 = vpop.f32.mrb[0].mxu0
        %v560 = vadd.f32 %v367, %v559
        %561 = vmatprep.mubr.f32.mxu0 0.0
        %562 = vmatmul.mubr.f32.gmra.mrb[0].mxu0 %v388
        %v563 = vpop.f32.mrb[0].mxu0
        %v564 = vadd.f32 %v371, %v563
        %v565 = vpop.f32.mrb[0].mxu0
        %v566 = vadd.f32 %v371, %v565
        %567 = vdwg.mxu0
        %568 = vmatprep.subr.mxu0 %v330
        %569 = vmatpush1.msra.mxu0 %v329
        %570 = vmatprep.subr.mxu0 %v338
        %571 = vmatpush1.msra.mxu0 %v337
        %572 = vmatprep.subr.mxu0 %v346
        %573 = vmatpush1.msra.mxu0 %v345
        %574 = vmatprep.subr.mxu0 %v354
        %575 = vmatpush1.msra.mxu0 %v353
        %576 = vmatprep.subr.mxu0 0.0
        %577 = vmatpush1.msra.mxu0 0.0
        %578 = vmatprep.subr.mxu0 0.0
        %579 = vmatpush1.msra.mxu0 0.0
        %580 = vmatprep.subr.mxu0 0.0
        %581 = vmatpush1.msra.mxu0 0.0
        %582 = vmatprep.subr.mxu0 0.0
        %583 = vmatpush1.msra.mxu0 0.0
        %584 = vmatprep.subr.mxu0 0.0
        %585 = vmatpush1.msra.mxu0 0.0
        %586 = vmatprep.subr.mxu0 0.0
        %587 = vmatpush1.msra.mxu0 0.0
        %588 = vmatprep.subr.mxu0 0.0
        %589 = vmatpush1.msra.mxu0 0.0
        %590 = vmatprep.subr.mxu0 0.0
        %591 = vmatpush1.msra.mxu0 0.0
        %592 = vmatprep.subr.mxu0 0.0
        %593 = vmatpush1.msra.mxu0 0.0
        %594 = vmatprep.subr.mxu0 0.0
        %595 = vmatpush1.msra.mxu0 0.0
        %596 = vmatprep.subr.mxu0 0.0
        %597 = vmatpush1.msra.mxu0 0.0
        %598 = vmatprep.subr.mxu0 0.0
        %599 = vmatpush1.msra.mxu0 0.0
        %600 = vmatprep.subr.mxu0 0.0
        %601 = vmatpush1.msra.mxu0 0.0
        %602 = vmatprep.subr.mxu0 0.0
        %603 = vmatpush1.msra.mxu0 0.0
        %604 = vmatprep.subr.mxu0 0.0
        %605 = vmatpush1.msra.mxu0 0.0
        %606 = vmatprep.subr.mxu0 0.0
        %607 = vmatpush1.msra.mxu0 0.0
        %608 = vmatprep.subr.mxu0 0.0
        %609 = vmatpush1.msra.mxu0 0.0
        %610 = vmatprep.subr.mxu0 0.0
        %611 = vmatpush1.msra.mxu0 0.0
        %612 = vmatprep.subr.mxu0 0.0
        %613 = vmatpush1.msra.mxu0 0.0
        %614 = vmatprep.subr.mxu0 0.0
        %615 = vmatpush1.msra.mxu0 0.0
        %616 = vmatprep.subr.mxu0 0.0
        %617 = vmatpush1.msra.mxu0 0.0
        %618 = vmatprep.subr.mxu0 0.0
        %619 = vmatpush1.msra.mxu0 0.0
        %620 = vmatprep.subr.mxu0 0.0
        %621 = vmatpush1.msra.mxu0 0.0
        %622 = vmatprep.subr.mxu0 0.0
        %623 = vmatpush1.msra.mxu0 0.0
        %624 = vmatprep.subr.mxu0 0.0
        %625 = vmatpush1.msra.mxu0 0.0
        %626 = vmatprep.subr.mxu0 0.0
        %627 = vmatpush1.msra.mxu0 0.0
        %628 = vmatprep.subr.mxu0 0.0
        %629 = vmatpush1.msra.mxu0 0.0
        %630 = vmatprep.subr.mxu0 0.0
        %631 = vmatpush1.msra.mxu0 0.0
        %632 = vmatprep.mubr.f32.mxu0 0.0
        %633 = vmatmul.mubr.f32.gmra.mrb[0].mxu0 %v382
        %v634 = vpop.f32.mrb[0].mxu0
        %v635 = vadd.f32 %v359, %v634
        %v636 = vpop.f32.mrb[0].mxu0
        %v637 = vadd.f32 %v359, %v636
        %638 = vmatprep.mubr.f32.mxu0 0.0
        %639 = vmatmul.mubr.f32.gmra.mrb[0].mxu0 %v384
        %v640 = vpop.f32.mrb[0].mxu0
        %v641 = vadd.f32 %v363, %v640
        %v642 = vpop.f32.mrb[0].mxu0
        %v643 = vadd.f32 %v363, %v642
        %644 = vmatprep.mubr.f32.mxu0 0.0
        %645 = vmatmul.mubr.f32.gmra.mrb[0].mxu0 %v386
        %v646 = vpop.f32.mrb[0].mxu0
        %v647 = vadd.f32 %v367, %v646
        %v648 = vpop.f32.mrb[0].mxu0
        %v649 = vadd.f32 %v367, %v648
        %650 = vmatprep.mubr.f32.mxu0 0.0
        %651 = vmatmul.mubr.f32.gmra.mrb[0].mxu0 %v388
        %v652 = vpop.f32.mrb[0].mxu0
        %v653 = vadd.f32 %v371, %v652
        %v654 = vpop.f32.mrb[0].mxu0
        %v655 = vadd.f32 %v371, %v654
        %656 = vdwg.mxu0
        %657 = vmatprep.subr.mxu0 %v332
        %658 = vmatpush1.msra.mxu0 %v331
        %659 = vmatprep.subr.mxu0 %v340
        %660 = vmatpush1.msra.mxu0 %v339
        %661 = vmatprep.subr.mxu0 %v348
        %662 = vmatpush1.msra.mxu0 %v347
        %663 = vmatprep.subr.mxu0 %v356
        %664 = vmatpush1.msra.mxu0 %v355
        %665 = vmatprep.subr.mxu0 0.0
        %666 = vmatpush1.msra.mxu0 0.0
        %667 = vmatprep.subr.mxu0 0.0
        %668 = vmatpush1.msra.mxu0 0.0
        %669 = vmatprep.subr.mxu0 0.0
        %670 = vmatpush1.msra.mxu0 0.0
        %671 = vmatprep.subr.mxu0 0.0
        %672 = vmatpush1.msra.mxu0 0.0
        %673 = vmatprep.subr.mxu0 0.0
        %674 = vmatpush1.msra.mxu0 0.0
        %675 = vmatprep.subr.mxu0 0.0
        %676 = vmatpush1.msra.mxu0 0.0
        %677 = vmatprep.subr.mxu0 0.0
        %678 = vmatpush1.msra.mxu0 0.0
        %679 = vmatprep.subr.mxu0 0.0
        %680 = vmatpush1.msra.mxu0 0.0
        %681 = vmatprep.subr.mxu0 0.0
        %682 = vmatpush1.msra.mxu0 0.0
        %683 = vmatprep.subr.mxu0 0.0
        %684 = vmatpush1.msra.mxu0 0.0
        %685 = vmatprep.subr.mxu0 0.0
        %686 = vmatpush1.msra.mxu0 0.0
        %687 = vmatprep.subr.mxu0 0.0
        %688 = vmatpush1.msra.mxu0 0.0
        %689 = vmatprep.subr.mxu0 0.0
        %690 = vmatpush1.msra.mxu0 0.0
        %691 = vmatprep.subr.mxu0 0.0
        %692 = vmatpush1.msra.mxu0 0.0
        %693 = vmatprep.subr.mxu0 0.0
        %694 = vmatpush1.msra.mxu0 0.0
        %695 = vmatprep.subr.mxu0 0.0
        %696 = vmatpush1.msra.mxu0 0.0
        %697 = vmatprep.subr.mxu0 0.0
        %698 = vmatpush1.msra.mxu0 0.0
        %699 = vmatprep.subr.mxu0 0.0
        %700 = vmatpush1.msra.mxu0 0.0
        %701 = vmatprep.subr.mxu0 0.0
        %702 = vmatpush1.msra.mxu0 0.0
        %703 = vmatprep.subr.mxu0 0.0
        %704 = vmatpush1.msra.mxu0 0.0
        %705 = vmatprep.subr.mxu0 0.0
        %706 = vmatpush1.msra.mxu0 0.0
        %707 = vmatprep.subr.mxu0 0.0
        %708 = vmatpush1.msra.mxu0 0.0
        %709 = vmatprep.subr.mxu0 0.0
        %710 = vmatpush1.msra.mxu0 0.0
        %711 = vmatprep.subr.mxu0 0.0
        %712 = vmatpush1.msra.mxu0 0.0
        %713 = vmatprep.subr.mxu0 0.0
        %714 = vmatpush1.msra.mxu0 0.0
        %715 = vmatprep.subr.mxu0 0.0
        %716 = vmatpush1.msra.mxu0 0.0
        %717 = vmatprep.subr.mxu0 0.0
        %718 = vmatpush1.msra.mxu0 0.0
        %719 = vmatprep.subr.mxu0 0.0
        %720 = vmatpush1.msra.mxu0 0.0
        %721 = vmatprep.mubr.f32.mxu0 0.0
        %722 = vmatmul.mubr.f32.gmra.mrb[0].mxu0 %v382
        %v723 = vpop.f32.mrb[0].mxu0
        %v724 = vadd.f32 %v359, %v723
        %v725 = vpop.f32.mrb[0].mxu0
        %v726 = vadd.f32 %v359, %v725
        %727 = vmatprep.mubr.f32.mxu0 0.0
        %728 = vmatmul.mubr.f32.gmra.mrb[0].mxu0 %v384
        %v729 = vpop.f32.mrb[0].mxu0
        %v730 = vadd.f32 %v363, %v729
        %v731 = vpop.f32.mrb[0].mxu0
        %v732 = vadd.f32 %v363, %v731
        %733 = vmatprep.mubr.f32.mxu0 0.0
        %734 = vmatmul.mubr.f32.gmra.mrb[0].mxu0 %v386
        %v735 = vpop.f32.mrb[0].mxu0
        %v736 = vadd.f32 %v367, %v735
        %v737 = vpop.f32.mrb[0].mxu0
        %v738 = vadd.f32 %v367, %v737
        %739 = vmatprep.mubr.f32.mxu0 0.0
        %740 = vmatmul.mubr.f32.gmra.mrb[0].mxu0 %v388
        %v741 = vpop.f32.mrb[0].mxu0
        %v742 = vadd.f32 %v371, %v741
        %v743 = vpop.f32.mrb[0].mxu0
        %v744 = vadd.f32 %v371, %v743
        %745 = vdwg.mxu0
        %v746 = vtanh.pop %v457
        %v747 = vtanh.pop %v459
        %v748 = vtanh.pop %v546
        %v749 = vtanh.pop %v548
        %v750 = vtanh.pop %v635
        %v751 = vtanh.pop %v637
        %v752 = vtanh.pop %v724
        %v753 = vtanh.pop %v726
        %v754 = vtanh.pop %v463
        %v755 = vtanh.pop %v465
        %v756 = vtanh.pop %v552
        %v757 = vtanh.pop %v554
        %v758 = vtanh.pop %v641
        %v759 = vtanh.pop %v643
        %v760 = vtanh.pop %v730
        %v761 = vtanh.pop %v732
        %v762 = vtanh.pop %v469
        %v763 = vtanh.pop %v471
        %v764 = vtanh.pop %v558
        %v765 = vtanh.pop %v560
        %v766 = vtanh.pop %v647
        %v767 = vtanh.pop %v649
        %v768 = vtanh.pop %v736
        %v769 = vtanh.pop %v738
        %v770 = vtanh.pop %v475
        %v771 = vtanh.pop %v477
        %v772 = vtanh.pop %v564
        %v773 = vtanh.pop %v566
        %v774 = vtanh.pop %v653
        %v775 = vtanh.pop %v655
        %v776 = vtanh.pop %v742
        %v777 = vtanh.pop %v744
        %778 = vset.pattern.permute.xlu0 3
        %779 = vperm.xlu0 %778, %v180
        %v780 = vpop.permute.xlu0 %779
        %782 = vset.pattern.permute.xlu0 3
        %783 = vperm.xlu0 %782, %v181
        %v784 = vpop.permute.xlu0 %783
        %786 = vset.pattern.permute.xlu0 3
        %787 = vperm.xlu0 %786, %v182
        %v788 = vpop.permute.xlu0 %787
        %789 = vset.pattern.permute.xlu0 3
        %790 = vperm.xlu0 %789, %v183
        %v791 = vpop.permute.xlu0 %790
        %792 = vrot.lane.b32.xlu0 %v180, 92
        %v793 = vpop.permute.xlu0 %792
        %794 = vrot.lane.b32.xlu0 %v181, 92
        %v795 = vpop.permute.xlu0 %794
        %796 = vrot.lane.b32.xlu0 %v182, 92
        %v797 = vpop.permute.xlu0 %796
        %798 = vrot.lane.b32.xlu0 %v183, 92
        %v799 = vpop.permute.xlu0 %798
        %v800 = vsel %vm381, %v793, 0
        %v802 = vsel %vm381, %v795, 0
        %v804 = vsel %vm381, %v797, 0
        %v806 = vsel %vm381, %v799, 0
        %808 = vmatprep.subr.mxu0 %v747
        %809 = vmatpush1.msra.mxu0 %v746
        %810 = vmatprep.subr.mxu0 %v755
        %811 = vmatpush1.msra.mxu0 %v754
        %812 = vmatprep.subr.mxu0 %v763
        %813 = vmatpush1.msra.mxu0 %v762
        %814 = vmatprep.subr.mxu0 %v771
        %815 = vmatpush1.msra.mxu0 %v770
        %816 = vmatprep.subr.mxu0 0.0
        %817 = vmatpush1.msra.mxu0 0.0
        %818 = vmatprep.subr.mxu0 0.0
        %819 = vmatpush1.msra.mxu0 0.0
        %820 = vmatprep.subr.mxu0 0.0
        %821 = vmatpush1.msra.mxu0 0.0
        %822 = vmatprep.subr.mxu0 0.0
        %823 = vmatpush1.msra.mxu0 0.0
        %824 = vmatprep.subr.mxu0 0.0
        %825 = vmatpush1.msra.mxu0 0.0
        %826 = vmatprep.subr.mxu0 0.0
        %827 = vmatpush1.msra.mxu0 0.0
        %828 = vmatprep.subr.mxu0 0.0
        %829 = vmatpush1.msra.mxu0 0.0
        %830 = vmatprep.subr.mxu0 0.0
        %831 = vmatpush1.msra.mxu0 0.0
        %832 = vmatprep.subr.mxu0 0.0
        %833 = vmatpush1.msra.mxu0 0.0
        %834 = vmatprep.subr.mxu0 0.0
        %835 = vmatpush1.msra.mxu0 0.0
        %836 = vmatprep.subr.mxu0 0.0
        %837 = vmatpush1.msra.mxu0 0.0
        %838 = vmatprep.subr.mxu0 0.0
        %839 = vmatpush1.msra.mxu0 0.0
        %840 = vmatprep.subr.mxu0 0.0
        %841 = vmatpush1.msra.mxu0 0.0
        %842 = vmatprep.subr.mxu0 0.0
        %843 = vmatpush1.msra.mxu0 0.0
        %844 = vmatprep.subr.mxu0 0.0
        %845 = vmatpush1.msra.mxu0 0.0
        %846 = vmatprep.subr.mxu0 0.0
        %847 = vmatpush1.msra.mxu0 0.0
        %848 = vmatprep.subr.mxu0 0.0
        %849 = vmatpush1.msra.mxu0 0.0
        %850 = vmatprep.subr.mxu0 0.0
        %851 = vmatpush1.msra.mxu0 0.0
        %852 = vmatprep.subr.mxu0 0.0
        %853 = vmatpush1.msra.mxu0 0.0
        %854 = vmatprep.subr.mxu0 0.0
        %855 = vmatpush1.msra.mxu0 0.0
        %856 = vmatprep.subr.mxu0 0.0
        %857 = vmatpush1.msra.mxu0 0.0
        %858 = vmatprep.subr.mxu0 0.0
        %859 = vmatpush1.msra.mxu0 0.0
        %860 = vmatprep.subr.mxu0 0.0
        %861 = vmatpush1.msra.mxu0 0.0
        %862 = vmatprep.subr.mxu0 0.0
        %863 = vmatpush1.msra.mxu0 0.0
        %864 = vmatprep.subr.mxu0 0.0
        %865 = vmatpush1.msra.mxu0 0.0
        %866 = vmatprep.subr.mxu0 0.0
        %867 = vmatpush1.msra.mxu0 0.0
        %868 = vmatprep.subr.mxu0 0.0
        %869 = vmatpush1.msra.mxu0 0.0
        %870 = vmatprep.subr.mxu0 0.0
        %871 = vmatpush1.msra.mxu0 0.0
        %872 = vmatprep.mubr.f32.mxu0 0.0
        %873 = vmatmul.mubr.f32.gmra.mrb[0].mxu0 %v800
        %v874 = vpop.f32.mrb[0].mxu0
        %v875 = vadd.f32 %v780, %v874
        %v876 = vpop.f32.mrb[0].mxu0
        %v877 = vadd.f32 %v780, %v876
        %878 = vmatprep.mubr.f32.mxu0 0.0
        %879 = vmatmul.mubr.f32.gmra.mrb[0].mxu0 %v802
        %v880 = vpop.f32.mrb[0].mxu0
        %v881 = vadd.f32 %v784, %v880
        %v882 = vpop.f32.mrb[0].mxu0
        %v883 = vadd.f32 %v784, %v882
        %884 = vmatprep.mubr.f32.mxu0 0.0
        %885 = vmatmul.mubr.f32.gmra.mrb[0].mxu0 %v804
        %v886 = vpop.f32.mrb[0].mxu0
        %v887 = vpop.f32.mrb[0].mxu0
        %888 = vmatprep.mubr.f32.mxu0 0.0
        %889 = vmatmul.mubr.f32.gmra.mrb[0].mxu0 %v806
        %v890 = vpop.f32.mrb[0].mxu0
        %v891 = vpop.f32.mrb[0].mxu0
        %892 = vdwg.mxu0
        %893 = vmatprep.subr.mxu0 %v749
        %894 = vmatpush1.msra.mxu0 %v748
        %895 = vmatprep.subr.mxu0 %v757
        %896 = vmatpush1.msra.mxu0 %v756
        %897 = vmatprep.subr.mxu0 %v765
        %898 = vmatpush1.msra.mxu0 %v764
        %899 = vmatprep.subr.mxu0 %v773
        %900 = vmatpush1.msra.mxu0 %v772
        %901 = vmatprep.subr.mxu0 0.0
        %902 = vmatpush1.msra.mxu0 0.0
        %903 = vmatprep.subr.mxu0 0.0
        %904 = vmatpush1.msra.mxu0 0.0
        %905 = vmatprep.subr.mxu0 0.0
        %906 = vmatpush1.msra.mxu0 0.0
        %907 = vmatprep.subr.mxu0 0.0
        %908 = vmatpush1.msra.mxu0 0.0
        %909 = vmatprep.subr.mxu0 0.0
        %910 = vmatpush1.msra.mxu0 0.0
        %911 = vmatprep.subr.mxu0 0.0
        %912 = vmatpush1.msra.mxu0 0.0
        %913 = vmatprep.subr.mxu0 0.0
        %914 = vmatpush1.msra.mxu0 0.0
        %915 = vmatprep.subr.mxu0 0.0
        %916 = vmatpush1.msra.mxu0 0.0
        %917 = vmatprep.subr.mxu0 0.0
        %918 = vmatpush1.msra.mxu0 0.0
        %919 = vmatprep.subr.mxu0 0.0
        %920 = vmatpush1.msra.mxu0 0.0
        %921 = vmatprep.subr.mxu0 0.0
        %922 = vmatpush1.msra.mxu0 0.0
        %923 = vmatprep.subr.mxu0 0.0
        %924 = vmatpush1.msra.mxu0 0.0
        %925 = vmatprep.subr.mxu0 0.0
        %926 = vmatpush1.msra.mxu0 0.0
        %927 = vmatprep.subr.mxu0 0.0
        %928 = vmatpush1.msra.mxu0 0.0
        %929 = vmatprep.subr.mxu0 0.0
        %930 = vmatpush1.msra.mxu0 0.0
        %931 = vmatprep.subr.mxu0 0.0
        %932 = vmatpush1.msra.mxu0 0.0
        %933 = vmatprep.subr.mxu0 0.0
        %934 = vmatpush1.msra.mxu0 0.0
        %935 = vmatprep.subr.mxu0 0.0
        %936 = vmatpush1.msra.mxu0 0.0
        %937 = vmatprep.subr.mxu0 0.0
        %938 = vmatpush1.msra.mxu0 0.0
        %939 = vmatprep.subr.mxu0 0.0
        %940 = vmatpush1.msra.mxu0 0.0
        %941 = vmatprep.subr.mxu0 0.0
        %942 = vmatpush1.msra.mxu0 0.0
        %943 = vmatprep.subr.mxu0 0.0
        %944 = vmatpush1.msra.mxu0 0.0
        %945 = vmatprep.subr.mxu0 0.0
        %946 = vmatpush1.msra.mxu0 0.0
        %947 = vmatprep.subr.mxu0 0.0
        %948 = vmatpush1.msra.mxu0 0.0
        %949 = vmatprep.subr.mxu0 0.0
        %950 = vmatpush1.msra.mxu0 0.0
        %951 = vmatprep.subr.mxu0 0.0
        %952 = vmatpush1.msra.mxu0 0.0
        %953 = vmatprep.subr.mxu0 0.0
        %954 = vmatpush1.msra.mxu0 0.0
        %955 = vmatprep.subr.mxu0 0.0
        %956 = vmatpush1.msra.mxu0 0.0
        %957 = vmatprep.mubr.f32.mxu0 0.0
        %958 = vmatmul.mubr.f32.gmra.mrb[0].mxu0 %v800
        %v959 = vpop.f32.mrb[0].mxu0
        %v960 = vadd.f32 %v780, %v959
        %v961 = vpop.f32.mrb[0].mxu0
        %v962 = vadd.f32 %v780, %v961
        %963 = vmatprep.mubr.f32.mxu0 0.0
        %964 = vmatmul.mubr.f32.gmra.mrb[0].mxu0 %v802
        %v965 = vpop.f32.mrb[0].mxu0
        %v966 = vadd.f32 %v784, %v965
        %v967 = vpop.f32.mrb[0].mxu0
        %v968 = vadd.f32 %v784, %v967
        %969 = vmatprep.mubr.f32.mxu0 0.0
        %970 = vmatmul.mubr.f32.gmra.mrb[0].mxu0 %v804
        %v971 = vpop.f32.mrb[0].mxu0
        %v972 = vpop.f32.mrb[0].mxu0
        %973 = vmatprep.mubr.f32.mxu0 0.0
        %974 = vmatmul.mubr.f32.gmra.mrb[0].mxu0 %v806
        %v975 = vpop.f32.mrb[0].mxu0
        %v976 = vpop.f32.mrb[0].mxu0
        %977 = vdwg.mxu0
        %978 = vmatprep.subr.mxu0 %v751
        %979 = vmatpush1.msra.mxu0 %v750
        %980 = vmatprep.subr.mxu0 %v759
        %981 = vmatpush1.msra.mxu0 %v758
        %982 = vmatprep.subr.mxu0 %v767
        %983 = vmatpush1.msra.mxu0 %v766
        %984 = vmatprep.subr.mxu0 %v775
        %985 = vmatpush1.msra.mxu0 %v774
        %986 = vmatprep.subr.mxu0 0.0
        %987 = vmatpush1.msra.mxu0 0.0
        %988 = vmatprep.subr.mxu0 0.0
        %989 = vmatpush1.msra.mxu0 0.0
        %990 = vmatprep.subr.mxu0 0.0
        %991 = vmatpush1.msra.mxu0 0.0
        %992 = vmatprep.subr.mxu0 0.0
        %993 = vmatpush1.msra.mxu0 0.0
        %994 = vmatprep.subr.mxu0 0.0
        %995 = vmatpush1.msra.mxu0 0.0
        %996 = vmatprep.subr.mxu0 0.0
        %997 = vmatpush1.msra.mxu0 0.0
        %998 = vmatprep.subr.mxu0 0.0
        %999 = vmatpush1.msra.mxu0 0.0
        %1000 = vmatprep.subr.mxu0 0.0
        %1001 = vmatpush1.msra.mxu0 0.0
        %1002 = vmatprep.subr.mxu0 0.0
        %1003 = vmatpush1.msra.mxu0 0.0
        %1004 = vmatprep.subr.mxu0 0.0
        %1005 = vmatpush1.msra.mxu0 0.0
        %1006 = vmatprep.subr.mxu0 0.0
        %1007 = vmatpush1.msra.mxu0 0.0
        %1008 = vmatprep.subr.mxu0 0.0
        %1009 = vmatpush1.msra.mxu0 0.0
        %1010 = vmatprep.subr.mxu0 0.0
        %1011 = vmatpush1.msra.mxu0 0.0
        %1012 = vmatprep.subr.mxu0 0.0
        %1013 = vmatpush1.msra.mxu0 0.0
        %1014 = vmatprep.subr.mxu0 0.0
        %1015 = vmatpush1.msra.mxu0 0.0
        %1016 = vmatprep.subr.mxu0 0.0
        %1017 = vmatpush1.msra.mxu0 0.0
        %1018 = vmatprep.subr.mxu0 0.0
        %1019 = vmatpush1.msra.mxu0 0.0
        %1020 = vmatprep.subr.mxu0 0.0
        %1021 = vmatpush1.msra.mxu0 0.0
        %1022 = vmatprep.subr.mxu0 0.0
        %1023 = vmatpush1.msra.mxu0 0.0
        %1024 = vmatprep.subr.mxu0 0.0
        %1025 = vmatpush1.msra.mxu0 0.0
        %1026 = vmatprep.subr.mxu0 0.0
        %1027 = vmatpush1.msra.mxu0 0.0
        %1028 = vmatprep.subr.mxu0 0.0
        %1029 = vmatpush1.msra.mxu0 0.0
        %1030 = vmatprep.subr.mxu0 0.0
        %1031 = vmatpush1.msra.mxu0 0.0
        %1032 = vmatprep.subr.mxu0 0.0
        %1033 = vmatpush1.msra.mxu0 0.0
        %1034 = vmatprep.subr.mxu0 0.0
        %1035 = vmatpush1.msra.mxu0 0.0
        %1036 = vmatprep.subr.mxu0 0.0
        %1037 = vmatpush1.msra.mxu0 0.0
        %1038 = vmatprep.subr.mxu0 0.0
        %1039 = vmatpush1.msra.mxu0 0.0
        %1040 = vmatprep.subr.mxu0 0.0
        %1041 = vmatpush1.msra.mxu0 0.0
        %1042 = vmatprep.mubr.f32.mxu0 0.0
        %1043 = vmatmul.mubr.f32.gmra.mrb[0].mxu0 %v800
        %v1044 = vpop.f32.mrb[0].mxu0
        %v1045 = vadd.f32 %v780, %v1044
        %v1046 = vpop.f32.mrb[0].mxu0
        %v1047 = vadd.f32 %v780, %v1046
        %1048 = vmatprep.mubr.f32.mxu0 0.0
        %1049 = vmatmul.mubr.f32.gmra.mrb[0].mxu0 %v802
        %v1050 = vpop.f32.mrb[0].mxu0
        %v1051 = vadd.f32 %v784, %v1050
        %v1052 = vpop.f32.mrb[0].mxu0
        %v1053 = vadd.f32 %v784, %v1052
        %1054 = vmatprep.mubr.f32.mxu0 0.0
        %1055 = vmatmul.mubr.f32.gmra.mrb[0].mxu0 %v804
        %v1056 = vpop.f32.mrb[0].mxu0
        %v1057 = vpop.f32.mrb[0].mxu0
        %1058 = vmatprep.mubr.f32.mxu0 0.0
        %1059 = vmatmul.mubr.f32.gmra.mrb[0].mxu0 %v806
        %v1060 = vpop.f32.mrb[0].mxu0
        %v1061 = vpop.f32.mrb[0].mxu0
        %1062 = vdwg.mxu0
        %1063 = vmatprep.subr.mxu0 %v753
        %1064 = vmatpush1.msra.mxu0 %v752
        %1065 = vmatprep.subr.mxu0 %v761
        %1066 = vmatpush1.msra.mxu0 %v760
        %1067 = vmatprep.subr.mxu0 %v769
        %1068 = vmatpush1.msra.mxu0 %v768
        %1069 = vmatprep.subr.mxu0 %v777
        %1070 = vmatpush1.msra.mxu0 %v776
        %1071 = vmatprep.subr.mxu0 0.0
        %1072 = vmatpush1.msra.mxu0 0.0
        %1073 = vmatprep.subr.mxu0 0.0
        %1074 = vmatpush1.msra.mxu0 0.0
        %1075 = vmatprep.subr.mxu0 0.0
        %1076 = vmatpush1.msra.mxu0 0.0
        %1077 = vmatprep.subr.mxu0 0.0
        %1078 = vmatpush1.msra.mxu0 0.0
        %1079 = vmatprep.subr.mxu0 0.0
        %1080 = vmatpush1.msra.mxu0 0.0
        %1081 = vmatprep.subr.mxu0 0.0
        %1082 = vmatpush1.msra.mxu0 0.0
        %1083 = vmatprep.subr.mxu0 0.0
        %1084 = vmatpush1.msra.mxu0 0.0
        %1085 = vmatprep.subr.mxu0 0.0
        %1086 = vmatpush1.msra.mxu0 0.0
        %1087 = vmatprep.subr.mxu0 0.0
        %1088 = vmatpush1.msra.mxu0 0.0
        %1089 = vmatprep.subr.mxu0 0.0
        %1090 = vmatpush1.msra.mxu0 0.0
        %1091 = vmatprep.subr.mxu0 0.0
        %1092 = vmatpush1.msra.mxu0 0.0
        %1093 = vmatprep.subr.mxu0 0.0
        %1094 = vmatpush1.msra.mxu0 0.0
        %1095 = vmatprep.subr.mxu0 0.0
        %1096 = vmatpush1.msra.mxu0 0.0
        %1097 = vmatprep.subr.mxu0 0.0
        %1098 = vmatpush1.msra.mxu0 0.0
        %1099 = vmatprep.subr.mxu0 0.0
        %1100 = vmatpush1.msra.mxu0 0.0
        %1101 = vmatprep.subr.mxu0 0.0
        %1102 = vmatpush1.msra.mxu0 0.0
        %1103 = vmatprep.subr.mxu0 0.0
        %1104 = vmatpush1.msra.mxu0 0.0
        %1105 = vmatprep.subr.mxu0 0.0
        %1106 = vmatpush1.msra.mxu0 0.0
        %1107 = vmatprep.subr.mxu0 0.0
        %1108 = vmatpush1.msra.mxu0 0.0
        %1109 = vmatprep.subr.mxu0 0.0
        %1110 = vmatpush1.msra.mxu0 0.0
        %1111 = vmatprep.subr.mxu0 0.0
        %1112 = vmatpush1.msra.mxu0 0.0
        %1113 = vmatprep.subr.mxu0 0.0
        %1114 = vmatpush1.msra.mxu0 0.0
        %1115 = vmatprep.subr.mxu0 0.0
        %1116 = vmatpush1.msra.mxu0 0.0
        %1117 = vmatprep.subr.mxu0 0.0
        %1118 = vmatpush1.msra.mxu0 0.0
        %1119 = vmatprep.subr.mxu0 0.0
        %1120 = vmatpush1.msra.mxu0 0.0
        %1121 = vmatprep.subr.mxu0 0.0
        %1122 = vmatpush1.msra.mxu0 0.0
        %1123 = vmatprep.subr.mxu0 0.0
        %1124 = vmatpush1.msra.mxu0 0.0
        %1125 = vmatprep.subr.mxu0 0.0
        %1126 = vmatpush1.msra.mxu0 0.0
        %1127 = vmatprep.mubr.f32.mxu0 0.0
        %1128 = vmatmul.mubr.f32.gmra.mrb[0].mxu0 %v800
        %v1129 = vpop.f32.mrb[0].mxu0
        %v1130 = vadd.f32 %v780, %v1129
        %v1131 = vpop.f32.mrb[0].mxu0
        %v1132 = vadd.f32 %v780, %v1131
        %1133 = vmatprep.mubr.f32.mxu0 0.0
        %1134 = vmatmul.mubr.f32.gmra.mrb[0].mxu0 %v802
        %v1135 = vpop.f32.mrb[0].mxu0
        %v1136 = vadd.f32 %v784, %v1135
        %v1137 = vpop.f32.mrb[0].mxu0
        %v1138 = vadd.f32 %v784, %v1137
        %1139 = vmatprep.mubr.f32.mxu0 0.0
        %1140 = vmatmul.mubr.f32.gmra.mrb[0].mxu0 %v804
        %v1141 = vpop.f32.mrb[0].mxu0
        %v1142 = vpop.f32.mrb[0].mxu0
        %1143 = vmatprep.mubr.f32.mxu0 0.0
        %1144 = vmatmul.mubr.f32.gmra.mrb[0].mxu0 %v806
        %v1145 = vpop.f32.mrb[0].mxu0
        %v1146 = vpop.f32.mrb[0].mxu0
        %1147 = vdwg.mxu0
        %v1148 = vand.u32 2147483647, %v179
        %vm1149 = vcmp.le.f32.partialorder %v1148, 0.7853982
        %vm1150 = vcmp.lt.s32.totalorder %v179, 0
        %v1151 = vand.u32 %v179, 2139095040
        %v1152 = vshrl.u32 %v1151, 23
        %v1153 = vsub.s32 %v1152, 127
        %v1154 = vand.u32 2147483647, %v179
        %v1155 = vand.u32 %v1154, 8388607
        %v1156 = vor.u32 %v1155, 8388608
        %v1157 = vsub.s32 0, %v1156
        %v1158 = vadd.s32 %v1153, 1
        %vm1159 = vcmp.gt.s32.totalorder %v1158, 0
        %v1160 = vsel %vm1159, %v1158, 0
        %v1161 = vshrl.u32 %v1160, 5
        %v1162 = vand.u32 %v1160, 31
        %v1163 = vsub.s32 32, %v1162
        %v1164 = vshrl.u32 683565275, %v1163
        %v1165 = vshll.u32 683565275, %v1162
        %v1166 = vshrl.u32 2475754826, %v1163
        %v1167 = vor.u32 %v1165, %v1166
        %v1168 = vshll.u32 2475754826, %v1162
        %v1169 = vshrl.u32 2131351028, %v1163
        %v1170 = vor.u32 %v1168, %v1169
        %v1171 = vshll.u32 2131351028, %v1162
        %v1172 = vshrl.u32 2102212464, %v1163
        %v1173 = vor.u32 %v1171, %v1172
        %v1174 = vshll.u32 2102212464, %v1162
        %v1175 = vshrl.u32 920167782, %v1163
        %v1176 = vor.u32 %v1174, %v1175
        %v1177 = vshll.u32 920167782, %v1162
        %v1178 = vshrl.u32 1326507024, %v1163
        %v1179 = vor.u32 %v1177, %v1178
        %vm1180 = vcmp.lt.s32.totalorder %v1161, 1
        %vm1181 = vcmp.lt.s32.totalorder %v1161, 2
        %vm1182 = vcmp.lt.s32.totalorder %v1161, 3
        %vm1183 = vcmp.lt.s32.totalorder %v1161, 4
        %v1184 = vsel %vm1180, %v1164, %v1167
        %v1185 = vsel %vm1183, %v1173, 2102212464
        %v1186 = vsel %vm1182, %v1170, %v1185
        %v1187 = vsel %vm1181, %v1184, %v1186
        %v1188 = vsel %vm1180, %v1167, %v1170
        %v1189 = vsel %vm1183, %v1176, 920167782
        %v1190 = vsel %vm1182, %v1173, %v1189
        %v1191 = vsel %vm1181, %v1188, %v1190
        %v1192 = vsel %vm1180, %v1170, %v1173
        %v1193 = vsel %vm1183, %v1179, 1326507024
        %v1194 = vsel %vm1182, %v1176, %v1193
        %v1195 = vsel %vm1181, %v1192, %v1194
        %v1196 = vshll.u32 %v1156, 8
        %v1197 = vmul.u32.u64.compose %v1196, %v1195
        %v1198 = vextract.low.u32 %v1197
        %v1199 = vextract.high.u32 %v1197
        %v1200 = vmul.u32.u64.compose %v1196, %v1191
        %v1201 = vextract.low.u32 %v1200
        %v1202 = vextract.high.u32 %v1200
        %v1203 = vmul.u32 %v1196, %v1187
        %v1204 = vadd.s32 %v1199, %v1201
        %vm1205 = vc.u32 %v1199, %v1201
        %v1206 = vadd.s32 %v1202, 1
        %v1207 = vsel %vm1205, %v1206, %v1202
        %v1208 = vadd.s32 %v1203, %v1207
        %v1209 = vadd.s32 %v1208, 536870912
        %v1210 = vshrl.u32 %v1209, 30
        %v1211 = vshll.u32 %v1210, 30
        %v1212 = vsub.s32 %v1208, %v1211
        %vm1213 = vcmp.lt.s32.totalorder %v1212, 0
        %v1214 = vsub.s32 0, %v1212
        %v1215 = vsel %vm1213, %v1214, %v1212
        %v1216 = vclz %v1215
        %v1217 = vsub.s32 %v1216, 2
        %vm1218 = vcmp.gt.s32.totalorder 0, %v1217
        %v1219 = vsel %vm1218, 0, %v1217
        %v1220 = vsub.s32 32, %v1219
        %v1221 = vshll.u32 %v1212, %v1219
        %v1222 = vshrl.u32 %v1204, %v1220
        %v1223 = vor.u32 %v1221, %v1222
        %v1224 = vsub.s32 4294967266, %v1219
        %v1225 = vadd.s32 %v1224, 127
        %v1226 = vshll.u32 %v1225, 23
        %v1227 = vor.u32 4788187, %v1226
        %v1228 = vand.u32 2147483647, %v1227
        %v1230 = vcvt.s32.f32 %v1223
        %v1231 = vmul.f32 %v1230, %v1228
        %v1232 = vxor.u32 %v1231, 2147483648
        %v1233 = vsel %vm1150, %v1232, %v1231
        %v1234 = vsub.s32 4, %v1210
        %v1235 = vsel %vm1150, %v1234, %v1210
        %v1236 = vsel %vm1149, %v179, %v1233
        %v1237 = vsel %vm1149, 0, %v1235
        %v1238 = vcosq.f32.pop %v1236
        %v1239 = vsinq.f32.pop %v1236
        %vm1240 = vweird.f32 %v179
        %v1241 = vand.u32 %v1237, 3
        %vm1242 = vcmp.lt.s32.totalorder %v1241, 2
        %vm1243 = vcmp.eq.s32.totalorder %v1241, 0
        %v1244 = vxor.u32 %v1239, 2147483648
        %v1245 = vsel %vm1243, %v1238, %v1244
        %vm1246 = vcmp.eq.s32.totalorder %v1241, 2
        %v1247 = vxor.u32 %v1238, 2147483648
        %v1248 = vsel %vm1246, %v1247, %v1239
        %v1249 = vsel %vm1242, %v1245, %v1248
        %v1250 = vsel %vm1240, nan, %v1249
        %v1252 = vlaneseq
        %v1253 = vshrl.u32 %v1252, 7
        %v1254 = vsub.s32 0, %v1253
        %v1255 = vrot.slane %v1250, %v1254
        %v1256 = vlaneseq
        %v1257 = vshrl.u32 %v1256, 7
        %v1258 = vsub.s32 1, %v1257
        %v1259 = vrot.slane %v1250, %v1258
        %v1260 = vlaneseq
        %v1261 = vshrl.u32 %v1260, 7
        %v1262 = vsub.s32 2, %v1261
        %v1263 = vrot.slane %v1250, %v1262
        %v1264 = vlaneseq
        %v1265 = vshrl.u32 %v1264, 7
        %v1266 = vsub.s32 3, %v1265
        %v1267 = vrot.slane %v1250, %v1266
        %v1268 = vlaneseq
        %v1269 = vshrl.u32 %v1268, 7
        %v1270 = vsub.s32 4, %v1269
        %v1271 = vrot.slane %v1250, %v1270
        %v1272 = vlaneseq
        %v1273 = vshrl.u32 %v1272, 7
        %v1274 = vsub.s32 5, %v1273
        %v1275 = vrot.slane %v1250, %v1274
        %v1276 = vlaneseq
        %v1277 = vshrl.u32 %v1276, 7
        %v1278 = vsub.s32 6, %v1277
        %v1279 = vrot.slane %v1250, %v1278
        %v1280 = vlaneseq
        %v1281 = vshrl.u32 %v1280, 7
        %v1282 = vsub.s32 7, %v1281
        %v1283 = vrot.slane %v1250, %v1282
        %v1292 = vmul.f32 %v875, %v1255
        %v1293 = vmul.f32 %v877, %v1259
        %v1294 = vmul.f32 %v960, %v1263
        %v1295 = vmul.f32 %v962, %v1267
        %v1296 = vmul.f32 %v1045, %v1271
        %v1297 = vmul.f32 %v1047, %v1275
        %v1298 = vmul.f32 %v1130, %v1279
        %v1299 = vmul.f32 %v1132, %v1283
        %v1308 = vrot.slane %v1292, 1
        %v1309 = vrot.slane %v1293, 1
        %v1310 = vrot.slane %v1294, 1
        %v1311 = vrot.slane %v1295, 1
        %v1312 = vrot.slane %v1296, 1
        %v1313 = vrot.slane %v1297, 1
        %v1314 = vrot.slane %v1298, 1
        %v1315 = vrot.slane %v1299, 1
        %v1324 = vadd.f32 %v875, %v1308
        %v1325 = vadd.f32 %v877, %v1309
        %v1326 = vadd.f32 %v960, %v1310
        %v1327 = vadd.f32 %v962, %v1311
        %v1328 = vadd.f32 %v1045, %v1312
        %v1329 = vadd.f32 %v1047, %v1313
        %v1330 = vadd.f32 %v1130, %v1314
        %v1331 = vadd.f32 %v1132, %v1315
        %v1332 = vmul.f32 %v1250, 3.0
        %v1333 = vmul.f32 %v1332, %v1250
        %v1334 = vsub.f32 %v1333, 1.0
        %v1335 = vmul.f32 %v1334, 0.5
        %v1337 = vlaneseq
        %v1338 = vshrl.u32 %v1337, 7
        %v1339 = vsub.s32 0, %v1338
        %v1340 = vrot.slane %v1335, %v1339
        %v1341 = vlaneseq
        %v1342 = vshrl.u32 %v1341, 7
        %v1343 = vsub.s32 1, %v1342
        %v1344 = vrot.slane %v1335, %v1343
        %v1345 = vlaneseq
        %v1346 = vshrl.u32 %v1345, 7
        %v1347 = vsub.s32 2, %v1346
        %v1348 = vrot.slane %v1335, %v1347
        %v1349 = vlaneseq
        %v1350 = vshrl.u32 %v1349, 7
        %v1351 = vsub.s32 3, %v1350
        %v1352 = vrot.slane %v1335, %v1351
        %v1353 = vlaneseq
        %v1354 = vshrl.u32 %v1353, 7
        %v1355 = vsub.s32 4, %v1354
        %v1356 = vrot.slane %v1335, %v1355
        %v1357 = vlaneseq
        %v1358 = vshrl.u32 %v1357, 7
        %v1359 = vsub.s32 5, %v1358
        %v1360 = vrot.slane %v1335, %v1359
        %v1361 = vlaneseq
        %v1362 = vshrl.u32 %v1361, 7
        %v1363 = vsub.s32 6, %v1362
        %v1364 = vrot.slane %v1335, %v1363
        %v1365 = vlaneseq
        %v1366 = vshrl.u32 %v1365, 7
        %v1367 = vsub.s32 7, %v1366
        %v1368 = vrot.slane %v1335, %v1367
        %v1377 = vmul.f32 %v875, %v1340
        %v1378 = vmul.f32 %v877, %v1344
        %v1379 = vmul.f32 %v960, %v1348
        %v1380 = vmul.f32 %v962, %v1352
        %v1381 = vmul.f32 %v1045, %v1356
        %v1382 = vmul.f32 %v1047, %v1360
        %v1383 = vmul.f32 %v1130, %v1364
        %v1384 = vmul.f32 %v1132, %v1368
        %v1393 = vrot.slane %v1377, 2
        %v1394 = vrot.slane %v1378, 2
        %v1395 = vrot.slane %v1379, 2
        %v1396 = vrot.slane %v1380, 2
        %v1397 = vrot.slane %v1381, 2
        %v1398 = vrot.slane %v1382, 2
        %v1399 = vrot.slane %v1383, 2
        %v1400 = vrot.slane %v1384, 2
        %v1409 = vadd.f32 %v1324, %v1393
        %v1410 = vadd.f32 %v1325, %v1394
        %v1411 = vadd.f32 %v1326, %v1395
        %v1412 = vadd.f32 %v1327, %v1396
        %v1413 = vadd.f32 %v1328, %v1397
        %v1414 = vadd.f32 %v1329, %v1398
        %v1415 = vadd.f32 %v1330, %v1399
        %v1416 = vadd.f32 %v1331, %v1400
        %v1417 = vmul.f32 %v1250, 5.0
        %v1418 = vmul.f32 %v1417, %v1335
        %v1419 = vmul.f32 %v1250, 2.0
        %v1420 = vsub.f32 %v1418, %v1419
        %v1421 = vmul.f32 %v1420, 0.33333334
        %v1423 = vlaneseq
        %v1424 = vshrl.u32 %v1423, 7
        %v1425 = vsub.s32 0, %v1424
        %v1426 = vrot.slane %v1421, %v1425
        %v1427 = vlaneseq
        %v1428 = vshrl.u32 %v1427, 7
        %v1429 = vsub.s32 1, %v1428
        %v1430 = vrot.slane %v1421, %v1429
        %v1431 = vlaneseq
        %v1432 = vshrl.u32 %v1431, 7
        %v1433 = vsub.s32 2, %v1432
        %v1434 = vrot.slane %v1421, %v1433
        %v1435 = vlaneseq
        %v1436 = vshrl.u32 %v1435, 7
        %v1437 = vsub.s32 3, %v1436
        %v1438 = vrot.slane %v1421, %v1437
        %v1439 = vlaneseq
        %v1440 = vshrl.u32 %v1439, 7
        %v1441 = vsub.s32 4, %v1440
        %v1442 = vrot.slane %v1421, %v1441
        %v1443 = vlaneseq
        %v1444 = vshrl.u32 %v1443, 7
        %v1445 = vsub.s32 5, %v1444
        %v1446 = vrot.slane %v1421, %v1445
        %v1447 = vlaneseq
        %v1448 = vshrl.u32 %v1447, 7
        %v1449 = vsub.s32 6, %v1448
        %v1450 = vrot.slane %v1421, %v1449
        %v1451 = vlaneseq
        %v1452 = vshrl.u32 %v1451, 7
        %v1453 = vsub.s32 7, %v1452
        %v1454 = vrot.slane %v1421, %v1453
        %v1463 = vmul.f32 %v875, %v1426
        %v1464 = vmul.f32 %v877, %v1430
        %v1465 = vmul.f32 %v960, %v1434
        %v1466 = vmul.f32 %v962, %v1438
        %v1467 = vmul.f32 %v1045, %v1442
        %v1468 = vmul.f32 %v1047, %v1446
        %v1469 = vmul.f32 %v1130, %v1450
        %v1470 = vmul.f32 %v1132, %v1454
        %v1479 = vrot.slane %v1463, 3
        %v1480 = vrot.slane %v1464, 3
        %v1481 = vrot.slane %v1465, 3
        %v1482 = vrot.slane %v1466, 3
        %v1483 = vrot.slane %v1467, 3
        %v1484 = vrot.slane %v1468, 3
        %v1485 = vrot.slane %v1469, 3
        %v1486 = vrot.slane %v1470, 3
        %v1495 = vadd.f32 %v1409, %v1479
        %v1496 = vadd.f32 %v1410, %v1480
        %v1497 = vadd.f32 %v1411, %v1481
        %v1498 = vadd.f32 %v1412, %v1482
        %v1499 = vadd.f32 %v1413, %v1483
        %v1500 = vadd.f32 %v1414, %v1484
        %v1501 = vadd.f32 %v1415, %v1485
        %v1502 = vadd.f32 %v1416, %v1486
        %v1503 = vmul.f32 %v1250, 7.0
        %v1504 = vmul.f32 %v1503, %v1421
        %v1505 = vmul.f32 %v1335, 3.0
        %v1506 = vsub.f32 %v1504, %v1505
        %v1507 = vmul.f32 %v1506, 0.25
        %v1509 = vlaneseq
        %v1510 = vshrl.u32 %v1509, 7
        %v1511 = vsub.s32 0, %v1510
        %v1512 = vrot.slane %v1507, %v1511
        %v1513 = vlaneseq
        %v1514 = vshrl.u32 %v1513, 7
        %v1515 = vsub.s32 1, %v1514
        %v1516 = vrot.slane %v1507, %v1515
        %v1517 = vlaneseq
        %v1518 = vshrl.u32 %v1517, 7
        %v1519 = vsub.s32 2, %v1518
        %v1520 = vrot.slane %v1507, %v1519
        %v1521 = vlaneseq
        %v1522 = vshrl.u32 %v1521, 7
        %v1523 = vsub.s32 3, %v1522
        %v1524 = vrot.slane %v1507, %v1523
        %v1525 = vlaneseq
        %v1526 = vshrl.u32 %v1525, 7
        %v1527 = vsub.s32 4, %v1526
        %v1528 = vrot.slane %v1507, %v1527
        %v1529 = vlaneseq
        %v1530 = vshrl.u32 %v1529, 7
        %v1531 = vsub.s32 5, %v1530
        %v1532 = vrot.slane %v1507, %v1531
        %v1533 = vlaneseq
        %v1534 = vshrl.u32 %v1533, 7
        %v1535 = vsub.s32 6, %v1534
        %v1536 = vrot.slane %v1507, %v1535
        %v1537 = vlaneseq
        %v1538 = vshrl.u32 %v1537, 7
        %v1539 = vsub.s32 7, %v1538
        %v1540 = vrot.slane %v1507, %v1539
        %v1549 = vmul.f32 %v875, %v1512
        %v1550 = vmul.f32 %v877, %v1516
        %v1551 = vmul.f32 %v960, %v1520
        %v1552 = vmul.f32 %v962, %v1524
        %v1553 = vmul.f32 %v1045, %v1528
        %v1554 = vmul.f32 %v1047, %v1532
        %v1555 = vmul.f32 %v1130, %v1536
        %v1556 = vmul.f32 %v1132, %v1540
        %v1565 = vrot.slane %v1549, 4
        %v1566 = vrot.slane %v1550, 4
        %v1567 = vrot.slane %v1551, 4
        %v1568 = vrot.slane %v1552, 4
        %v1569 = vrot.slane %v1553, 4
        %v1570 = vrot.slane %v1554, 4
        %v1571 = vrot.slane %v1555, 4
        %v1572 = vrot.slane %v1556, 4
        %v1581 = vadd.f32 %v1495, %v1565
        %v1582 = vadd.f32 %v1496, %v1566
        %v1583 = vadd.f32 %v1497, %v1567
        %v1584 = vadd.f32 %v1498, %v1568
        %v1585 = vadd.f32 %v1499, %v1569
        %v1586 = vadd.f32 %v1500, %v1570
        %v1587 = vadd.f32 %v1501, %v1571
        %v1588 = vadd.f32 %v1502, %v1572
        %v1589 = vmul.f32 %v1250, 9.0
        %v1590 = vmul.f32 %v1589, %v1507
        %v1591 = vmul.f32 %v1421, 4.0
        %v1592 = vsub.f32 %v1590, %v1591
        %v1593 = vmul.f32 %v1592, 0.2
        %v1595 = vlaneseq
        %v1596 = vshrl.u32 %v1595, 7
        %v1597 = vsub.s32 0, %v1596
        %v1598 = vrot.slane %v1593, %v1597
        %v1599 = vlaneseq
        %v1600 = vshrl.u32 %v1599, 7
        %v1601 = vsub.s32 1, %v1600
        %v1602 = vrot.slane %v1593, %v1601
        %v1603 = vlaneseq
        %v1604 = vshrl.u32 %v1603, 7
        %v1605 = vsub.s32 2, %v1604
        %v1606 = vrot.slane %v1593, %v1605
        %v1607 = vlaneseq
        %v1608 = vshrl.u32 %v1607, 7
        %v1609 = vsub.s32 3, %v1608
        %v1610 = vrot.slane %v1593, %v1609
        %v1611 = vlaneseq
        %v1612 = vshrl.u32 %v1611, 7
        %v1613 = vsub.s32 4, %v1612
        %v1614 = vrot.slane %v1593, %v1613
        %v1615 = vlaneseq
        %v1616 = vshrl.u32 %v1615, 7
        %v1617 = vsub.s32 5, %v1616
        %v1618 = vrot.slane %v1593, %v1617
        %v1619 = vlaneseq
        %v1620 = vshrl.u32 %v1619, 7
        %v1621 = vsub.s32 6, %v1620
        %v1622 = vrot.slane %v1593, %v1621
        %v1623 = vlaneseq
        %v1624 = vshrl.u32 %v1623, 7
        %v1625 = vsub.s32 7, %v1624
        %v1626 = vrot.slane %v1593, %v1625
        %v1635 = vmul.f32 %v875, %v1598
        %v1636 = vmul.f32 %v877, %v1602
        %v1637 = vmul.f32 %v960, %v1606
        %v1638 = vmul.f32 %v962, %v1610
        %v1639 = vmul.f32 %v1045, %v1614
        %v1640 = vmul.f32 %v1047, %v1618
        %v1641 = vmul.f32 %v1130, %v1622
        %v1642 = vmul.f32 %v1132, %v1626
        %v1651 = vrot.slane %v1635, 5
        %v1652 = vrot.slane %v1636, 5
        %v1653 = vrot.slane %v1637, 5
        %v1654 = vrot.slane %v1638, 5
        %v1655 = vrot.slane %v1639, 5
        %v1656 = vrot.slane %v1640, 5
        %v1657 = vrot.slane %v1641, 5
        %v1658 = vrot.slane %v1642, 5
        %v1667 = vadd.f32 %v1581, %v1651
        %v1668 = vadd.f32 %v1582, %v1652
        %v1669 = vadd.f32 %v1583, %v1653
        %v1670 = vadd.f32 %v1584, %v1654
        %v1671 = vadd.f32 %v1585, %v1655
        %v1672 = vadd.f32 %v1586, %v1656
        %v1673 = vadd.f32 %v1587, %v1657
        %v1674 = vadd.f32 %v1588, %v1658
        %v1675 = vmul.f32 %v1250, 11.0
        %v1676 = vmul.f32 %v1675, %v1593
        %v1677 = vmul.f32 %v1507, 5.0
        %v1678 = vsub.f32 %v1676, %v1677
        %v1679 = vmul.f32 %v1678, 0.16666667
        %v1681 = vlaneseq
        %v1682 = vshrl.u32 %v1681, 7
        %v1683 = vsub.s32 0, %v1682
        %v1684 = vrot.slane %v1679, %v1683
        %v1685 = vlaneseq
        %v1686 = vshrl.u32 %v1685, 7
        %v1687 = vsub.s32 1, %v1686
        %v1688 = vrot.slane %v1679, %v1687
        %v1689 = vlaneseq
        %v1690 = vshrl.u32 %v1689, 7
        %v1691 = vsub.s32 2, %v1690
        %v1692 = vrot.slane %v1679, %v1691
        %v1693 = vlaneseq
        %v1694 = vshrl.u32 %v1693, 7
        %v1695 = vsub.s32 3, %v1694
        %v1696 = vrot.slane %v1679, %v1695
        %v1697 = vlaneseq
        %v1698 = vshrl.u32 %v1697, 7
        %v1699 = vsub.s32 4, %v1698
        %v1700 = vrot.slane %v1679, %v1699
        %v1701 = vlaneseq
        %v1702 = vshrl.u32 %v1701, 7
        %v1703 = vsub.s32 5, %v1702
        %v1704 = vrot.slane %v1679, %v1703
        %v1705 = vlaneseq
        %v1706 = vshrl.u32 %v1705, 7
        %v1707 = vsub.s32 6, %v1706
        %v1708 = vrot.slane %v1679, %v1707
        %v1709 = vlaneseq
        %v1710 = vshrl.u32 %v1709, 7
        %v1711 = vsub.s32 7, %v1710
        %v1712 = vrot.slane %v1679, %v1711
        %v1721 = vmul.f32 %v875, %v1684
        %v1722 = vmul.f32 %v877, %v1688
        %v1723 = vmul.f32 %v960, %v1692
        %v1724 = vmul.f32 %v962, %v1696
        %v1725 = vmul.f32 %v1045, %v1700
        %v1726 = vmul.f32 %v1047, %v1704
        %v1727 = vmul.f32 %v1130, %v1708
        %v1728 = vmul.f32 %v1132, %v1712
        %v1737 = vrot.slane %v1721, 6
        %v1738 = vrot.slane %v1722, 6
        %v1739 = vrot.slane %v1723, 6
        %v1740 = vrot.slane %v1724, 6
        %v1741 = vrot.slane %v1725, 6
        %v1742 = vrot.slane %v1726, 6
        %v1743 = vrot.slane %v1727, 6
        %v1744 = vrot.slane %v1728, 6
        %v1753 = vadd.f32 %v1667, %v1737
        %v1754 = vadd.f32 %v1668, %v1738
        %v1755 = vadd.f32 %v1669, %v1739
        %v1756 = vadd.f32 %v1670, %v1740
        %v1757 = vadd.f32 %v1671, %v1741
        %v1758 = vadd.f32 %v1672, %v1742
        %v1759 = vadd.f32 %v1673, %v1743
        %v1760 = vadd.f32 %v1674, %v1744
        %v1761 = vmul.f32 %v1250, 13.0
        %v1762 = vmul.f32 %v1761, %v1679
        %v1763 = vmul.f32 %v1593, 6.0
        %v1764 = vsub.f32 %v1762, %v1763
        %v1765 = vmul.f32 %v1764, 0.14285715
        %v1767 = vlaneseq
        %v1768 = vshrl.u32 %v1767, 7
        %v1769 = vsub.s32 0, %v1768
        %v1770 = vrot.slane %v1765, %v1769
        %v1771 = vlaneseq
        %v1772 = vshrl.u32 %v1771, 7
        %v1773 = vsub.s32 1, %v1772
        %v1774 = vrot.slane %v1765, %v1773
        %v1775 = vlaneseq
        %v1776 = vshrl.u32 %v1775, 7
        %v1777 = vsub.s32 2, %v1776
        %v1778 = vrot.slane %v1765, %v1777
        %v1779 = vlaneseq
        %v1780 = vshrl.u32 %v1779, 7
        %v1781 = vsub.s32 3, %v1780
        %v1782 = vrot.slane %v1765, %v1781
        %v1783 = vlaneseq
        %v1784 = vshrl.u32 %v1783, 7
        %v1785 = vsub.s32 4, %v1784
        %v1786 = vrot.slane %v1765, %v1785
        %v1787 = vlaneseq
        %v1788 = vshrl.u32 %v1787, 7
        %v1789 = vsub.s32 5, %v1788
        %v1790 = vrot.slane %v1765, %v1789
        %v1791 = vlaneseq
        %v1792 = vshrl.u32 %v1791, 7
        %v1793 = vsub.s32 6, %v1792
        %v1794 = vrot.slane %v1765, %v1793
        %v1795 = vlaneseq
        %v1796 = vshrl.u32 %v1795, 7
        %v1797 = vsub.s32 7, %v1796
        %v1798 = vrot.slane %v1765, %v1797
        %v1807 = vmul.f32 %v875, %v1770
        %v1808 = vmul.f32 %v877, %v1774
        %v1809 = vmul.f32 %v960, %v1778
        %v1810 = vmul.f32 %v962, %v1782
        %v1811 = vmul.f32 %v1045, %v1786
        %v1812 = vmul.f32 %v1047, %v1790
        %v1813 = vmul.f32 %v1130, %v1794
        %v1814 = vmul.f32 %v1132, %v1798
        %v1823 = vrot.slane %v1807, 7
        %v1824 = vrot.slane %v1808, 7
        %v1825 = vrot.slane %v1809, 7
        %v1826 = vrot.slane %v1810, 7
        %v1827 = vrot.slane %v1811, 7
        %v1828 = vrot.slane %v1812, 7
        %v1829 = vrot.slane %v1813, 7
        %v1830 = vrot.slane %v1814, 7
        %v1839 = vadd.f32 %v1753, %v1823
        %v1840 = vadd.f32 %v1754, %v1824
        %v1841 = vadd.f32 %v1755, %v1825
        %v1842 = vadd.f32 %v1756, %v1826
        %v1843 = vadd.f32 %v1757, %v1827
        %v1844 = vadd.f32 %v1758, %v1828
        %v1845 = vadd.f32 %v1759, %v1829
        %v1846 = vadd.f32 %v1760, %v1830
        %v1847 = vmul.f32 %v1250, 15.0
        %v1848 = vmul.f32 %v1847, %v1765
        %v1849 = vmul.f32 %v1679, 7.0
        %v1850 = vsub.f32 %v1848, %v1849
        %v1851 = vmul.f32 %v1850, 0.125
        %v1853 = vlaneseq
        %v1854 = vshrl.u32 %v1853, 7
        %v1855 = vsub.s32 0, %v1854
        %v1856 = vrot.slane %v1851, %v1855
        %v1857 = vlaneseq
        %v1858 = vshrl.u32 %v1857, 7
        %v1859 = vsub.s32 1, %v1858
        %v1860 = vrot.slane %v1851, %v1859
        %v1861 = vlaneseq
        %v1862 = vshrl.u32 %v1861, 7
        %v1863 = vsub.s32 2, %v1862
        %v1864 = vrot.slane %v1851, %v1863
        %v1865 = vlaneseq
        %v1866 = vshrl.u32 %v1865, 7
        %v1867 = vsub.s32 3, %v1866
        %v1868 = vrot.slane %v1851, %v1867
        %v1869 = vlaneseq
        %v1870 = vshrl.u32 %v1869, 7
        %v1871 = vsub.s32 4, %v1870
        %v1872 = vrot.slane %v1851, %v1871
        %v1873 = vlaneseq
        %v1874 = vshrl.u32 %v1873, 7
        %v1875 = vsub.s32 5, %v1874
        %v1876 = vrot.slane %v1851, %v1875
        %v1877 = vlaneseq
        %v1878 = vshrl.u32 %v1877, 7
        %v1879 = vsub.s32 6, %v1878
        %v1880 = vrot.slane %v1851, %v1879
        %v1881 = vlaneseq
        %v1882 = vshrl.u32 %v1881, 7
        %v1883 = vsub.s32 7, %v1882
        %v1884 = vrot.slane %v1851, %v1883
        %v1893 = vmul.f32 %v881, %v1856
        %v1894 = vmul.f32 %v883, %v1860
        %v1895 = vmul.f32 %v966, %v1864
        %v1896 = vmul.f32 %v968, %v1868
        %v1897 = vmul.f32 %v1051, %v1872
        %v1898 = vmul.f32 %v1053, %v1876
        %v1899 = vmul.f32 %v1136, %v1880
        %v1900 = vmul.f32 %v1138, %v1884
        %v1901 = vadd.f32 %v1839, %v1893
        %v1902 = vadd.f32 %v1840, %v1894
        %v1903 = vadd.f32 %v1841, %v1895
        %v1904 = vadd.f32 %v1842, %v1896
        %v1905 = vadd.f32 %v1843, %v1897
        %v1906 = vadd.f32 %v1844, %v1898
        %v1907 = vadd.f32 %v1845, %v1899
        %v1908 = vadd.f32 %v1846, %v1900
        %v1909 = vmul.f32 %v1250, 17.0
        %v1910 = vmul.f32 %v1909, %v1851
        %v1911 = vmul.f32 %v1765, 8.0
        %v1912 = vsub.f32 %v1910, %v1911
        %v1913 = vmul.f32 %v1912, 0.11111111
        %v1915 = vlaneseq
        %v1916 = vshrl.u32 %v1915, 7
        %v1917 = vsub.s32 0, %v1916
        %v1918 = vrot.slane %v1913, %v1917
        %v1919 = vlaneseq
        %v1920 = vshrl.u32 %v1919, 7
        %v1921 = vsub.s32 1, %v1920
        %v1922 = vrot.slane %v1913, %v1921
        %v1923 = vlaneseq
        %v1924 = vshrl.u32 %v1923, 7
        %v1925 = vsub.s32 2, %v1924
        %v1926 = vrot.slane %v1913, %v1925
        %v1927 = vlaneseq
        %v1928 = vshrl.u32 %v1927, 7
        %v1929 = vsub.s32 3, %v1928
        %v1930 = vrot.slane %v1913, %v1929
        %v1931 = vlaneseq
        %v1932 = vshrl.u32 %v1931, 7
        %v1933 = vsub.s32 4, %v1932
        %v1934 = vrot.slane %v1913, %v1933
        %v1935 = vlaneseq
        %v1936 = vshrl.u32 %v1935, 7
        %v1937 = vsub.s32 5, %v1936
        %v1938 = vrot.slane %v1913, %v1937
        %v1939 = vlaneseq
        %v1940 = vshrl.u32 %v1939, 7
        %v1941 = vsub.s32 6, %v1940
        %v1942 = vrot.slane %v1913, %v1941
        %v1943 = vlaneseq
        %v1944 = vshrl.u32 %v1943, 7
        %v1945 = vsub.s32 7, %v1944
        %v1946 = vrot.slane %v1913, %v1945
        %v1955 = vmul.f32 %v881, %v1918
        %v1956 = vmul.f32 %v883, %v1922
        %v1957 = vmul.f32 %v966, %v1926
        %v1958 = vmul.f32 %v968, %v1930
        %v1959 = vmul.f32 %v1051, %v1934
        %v1960 = vmul.f32 %v1053, %v1938
        %v1961 = vmul.f32 %v1136, %v1942
        %v1962 = vmul.f32 %v1138, %v1946
        %v1971 = vrot.slane %v1955, 1
        %v1972 = vrot.slane %v1956, 1
        %v1973 = vrot.slane %v1957, 1
        %v1974 = vrot.slane %v1958, 1
        %v1975 = vrot.slane %v1959, 1
        %v1976 = vrot.slane %v1960, 1
        %v1977 = vrot.slane %v1961, 1
        %v1978 = vrot.slane %v1962, 1
        %v1987 = vadd.f32 %v1901, %v1971
        %v1988 = vadd.f32 %v1902, %v1972
        %v1989 = vadd.f32 %v1903, %v1973
        %v1990 = vadd.f32 %v1904, %v1974
        %v1991 = vadd.f32 %v1905, %v1975
        %v1992 = vadd.f32 %v1906, %v1976
        %v1993 = vadd.f32 %v1907, %v1977
        %v1994 = vadd.f32 %v1908, %v1978
        %v2003 = vcombine.low %v1987, %v1988
        %v2004 = vcombine.low %v1989, %v1990
        %v2005 = vcombine.low %v1991, %v1992
        %v2006 = vcombine.low %v1993, %v1994
        %v2008 = vunpack.c.l.s4 1966171168
        %v2009 = vunpack.c.0.s8 %v2008
        %v2010 = vlaneseq
        %v2011 = vshrl.u32 %v2010, 7
        %v2012 = vsub.s32 %v2009, %v2011
        %v2013 = vrot.slane %v2003, %v2012
        %v2015 = vunpack.c.l.s4 1966171168
        %v2016 = vunpack.c.0.s8 %v2015
        %v2017 = vlaneseq
        %v2018 = vshrl.u32 %v2017, 7
        %v2019 = vsub.s32 %v2016, %v2018
        %v2020 = vrot.slane %v2004, %v2019
        %v2022 = vunpack.c.l.s4 1966171168
        %v2023 = vunpack.c.0.s8 %v2022
        %v2024 = vlaneseq
        %v2025 = vshrl.u32 %v2024, 7
        %v2026 = vsub.s32 %v2023, %v2025
        %v2027 = vrot.slane %v2005, %v2026
        %v2029 = vunpack.c.l.s4 1966171168
        %v2030 = vunpack.c.0.s8 %v2029
        %v2031 = vlaneseq
        %v2032 = vshrl.u32 %v2031, 7
        %v2033 = vsub.s32 %v2030, %v2032
        %v2034 = vrot.slane %v2006, %v2033
        %v2035 = vcombine.low %v2013, %v2020
        %v2036 = vcombine.low %v2027, %v2034
        %v2038 = vunpack.c.l.s4 1966171168
        %v2039 = vunpack.c.0.s8 %v2038
        %v2040 = vlaneseq
        %v2041 = vshrl.u32 %v2040, 7
        %v2042 = vsub.s32 %v2039, %v2041
        %v2043 = vrot.slane %v2035, %v2042
        %v2045 = vunpack.c.l.s4 1966171168
        %v2046 = vunpack.c.0.s8 %v2045
        %v2047 = vlaneseq
        %v2048 = vshrl.u32 %v2047, 7
        %v2049 = vsub.s32 %v2046, %v2048
        %v2050 = vrot.slane %v2036, %v2049
        %v2051 = vcombine.low %v2043, %v2050
        %2053 = vst [vmem:[%s174] sm:$0xff] %v2051
        %s2054 = sand.u32 %s75, 1
        %s2055 = scalar_lea.sflag [#allocation4], %s2054
        %s2056 = sand.u32 %s75, 1
        %s2057 = smul.addr %s2056, 8
        %s2058 = scalar_lea.vmem [#allocation7], %s2057
        // Predicated region
        $region37: #{tpu_custom_call.1} parent=27 // pred_check
          %p2059 = pneg %p85
        $region38: #{tpu_custom_call.1} parent=27 // pred_check_branch
          %2061 = sbr.rel (%p2059) target = $region40
        $region39: #{tpu_custom_call.1} parent=27 // pred_region
          %s2062 = smul.u32 8, %s20
          %s2064 = ssub.s32 128, 128
          %2065 = vsyncadd %s2055, %s2064
          %s2066 = smul.addr %s2062, 16
          %s2067 = scalar_lea.hbm %s2, %s2066
          %s2069 = sshll.u32 %s2058, 4
          %s2070 = int_to_ptr.vmem [resolvable:$true] %s2069
          %2072 = dma.vmem_to_hbm [thread:$0]  %s2070, 128, %s2067, %s2055
        $region40: #{tpu_custom_call.1} parent=27 // pred_fallthru
          _
      $region28: #{tpu_custom_call.1} parent=5 // pred_fallthru
        _
      %p2073 = scmp.le.s32.totalorder 2, %s15
      // Predicated region
      $region41: #{tpu_custom_call.1} parent=5 // pred_check
        %p2074 = pneg %p2073
      $region42: #{tpu_custom_call.1} parent=5 // pred_check_branch
        %2076 = sbr.rel (%p2074) target = $region44
      $region43: #{tpu_custom_call.1} parent=5 // pred_region
        %s2077 = ssub.s32 %s15, 2
        // Predicated region
        $region45: #{tpu_custom_call.1} parent=43 // pred_check
          %p2078 = pneg %p91
        $region46: #{tpu_custom_call.1} parent=43 // pred_check_branch
          %2080 = sbr.rel (%p2078) target = $region48
        $region47: #{tpu_custom_call.1} parent=43 // pred_region
          %s2081 = sand.u32 %s76, 1
          %s2082 = scalar_lea.sflag [#allocation4], %s2081
          %s2083 = sand.u32 %s76, 1
          %s2084 = smul.addr %s2083, 8
          %s2085 = scalar_lea.vmem [#allocation7], %s2084
          %2086 = dma.done %s2082, 128
        $region48: #{tpu_custom_call.1} parent=43 // pred_fallthru
          _
      $region44: #{tpu_custom_call.1} parent=5 // pred_fallthru
        _
    $region6: #{tpu_custom_call.1} parent=1 // loop_footer
      %s19 = sadd.s32 1, %s15
    $region7: #{tpu_custom_call.1} parent=1 // loop_footer_branch
      %14 = sbr.rel target = $region3
    $region8: #{tpu_custom_call.1} parent=1 // loop_exit
      _
    %2087 = vsyncpa [#allocation3], 1
    %s2088 = scalar_lea.sflag [#allocation3], 1
    %2089 = vsyncpa %s2088, 1
    %2090 = vsyncpa [#allocation6], 1
    %2091 = vsyncpa [#allocation4], 1
    %s2092 = scalar_lea.sflag [#allocation4], 1
    %2093 = vsyncpa %s2092, 1

</llo_original>
